<compile_context>
chip_gen: v5e
topology: v5e:2x2
jax: 0.10.0
libtpu: 0.0.40
codegen_flags: <defaults>
</compile_context>

<pallas_src>
import functools

import jax
import jax.numpy as jnp
from jax.experimental import pallas as pl
from jax.experimental.pallas import tpu as pltpu

BN_EPS = 1e-5
_LANE = 128      # lane width / MXU column multiple
_SUBLANE = 8


def _round_up(x, m):
    return (x + m - 1) // m * m


# ----------------------------------------------------------------------------
# Pallas kernels
# ----------------------------------------------------------------------------
def _hidden_layer_kernel(normalize_input, n_ref, x_ref, sc_in_ref, sh_in_ref,
                         w_ref, b_ref, gamma_ref, beta_ref,
                         y_ref, sc_out_ref, sh_out_ref, sum_sc, sumsq_sc):
    """Hidden layer tile: (optional prev BN+ReLU) -> x @ W + b -> BN stats.

    Emits the pre-activation tile (bf16) and, on the last grid step, the affine
    (scale, shift) that the *next* layer's kernel uses to apply this layer's
    BatchNorm + ReLU.
    """
    i = pl.program_id(0)
    tile_n = y_ref.shape[0]

    @pl.when(i == 0)
    def _init():
        sum_sc[...] = jnp.zeros_like(sum_sc)
        sumsq_sc[...] = jnp.zeros_like(sumsq_sc)

    x = x_ref[...].astype(jnp.float32)
    if normalize_input:
        # Previous layer's BatchNorm (affine form) + ReLU, folded in (f32 VPU).
        x = jnp.maximum(x * sc_in_ref[...] + sh_in_ref[...], 0.0)

    # bf16 MXU matmul with f32 accumulation; bias add in f32.
    y = jnp.dot(x.astype(jnp.bfloat16), w_ref[...],
                preferred_element_type=jnp.float32) + b_ref[...]
    y_ref[...] = y.astype(y_ref.dtype)

    # Batch statistics for this layer's BN, masking rows beyond the true batch.
    row = i * tile_n + jax.lax.broadcasted_iota(jnp.int32, (tile_n, 1), 0)
    y_valid = jnp.where(row < n_ref[0], y, 0.0)
    sum_sc[...] += jnp.sum(y_valid, axis=0, keepdims=True)
    sumsq_sc[...] += jnp.sum(y_valid * y_valid, axis=0, keepdims=True)

    @pl.when(i == pl.num_programs(0) - 1)
    def _finalize():
        inv_n = 1.0 / n_ref[0].astype(jnp.float32)
        mean = sum_sc[...] * inv_n
        # Biased (divide-by-N) variance == PyTorch BatchNorm1d training mode.
        var = jnp.maximum(sumsq_sc[...] * inv_n - mean * mean, 0.0)
        scale = gamma_ref[...] * jax.lax.rsqrt(var + BN_EPS)   # rsqrt -> EUP
        sc_out_ref[...] = scale
        sh_out_ref[...] = beta_ref[...] - mean * scale


def _final_layer_kernel(normalize_input, x_ref, sc_in_ref, sh_in_ref,
                        w_ref, b_ref, o_ref):
    """Final layer tile: (optional prev BN+ReLU) -> x @ W + b."""
    x = x_ref[...].astype(jnp.float32)
    if normalize_input:
        x = jnp.maximum(x * sc_in_ref[...] + sh_in_ref[...], 0.0)
    y = jnp.dot(x.astype(jnp.bfloat16), w_ref[...],
                preferred_element_type=jnp.float32) + b_ref[...]
    o_ref[...] = y.astype(o_ref.dtype)


# ----------------------------------------------------------------------------
# pallas_call wrappers
# ----------------------------------------------------------------------------
def _vmem_limit(streamed_bytes, resident_bytes):
    # 2x for double-buffered streamed blocks + resident weights + headroom.
    # Clamp to <= 48 MiB so the request is safe on v7x (64 MiB VMEM per TC).
    need = 2 * streamed_bytes + resident_bytes + (4 << 20)
    return int(min(max(need, 32 << 20), 48 << 20))


def _hidden_layer(x, scale_in, shift_in, w, b, gamma, beta, n_rows, *,
                  normalize_input, tile_n):
    n_pad, f_in = x.shape
    f_out = w.shape[1]
    grid = (n_pad // tile_n,)

    streamed = tile_n * f_in * x.dtype.itemsize + tile_n * f_out * 2   # x + y(bf16)
    resident = f_in * f_out * 2 + (2 * f_in + 5 * f_out) * 4
    bytes_hbm = (n_pad * f_in * x.dtype.itemsize + n_pad * f_out * 2 +
                 f_in * f_out * 2 + (2 * f_in + 5 * f_out) * 4)

    kernel = functools.partial(_hidden_layer_kernel, normalize_input)
    return pl.pallas_call(
        kernel,
        out_shape=(
            jax.ShapeDtypeStruct((n_pad, f_out), jnp.bfloat16),   # pre-activation
            jax.ShapeDtypeStruct((1, f_out), jnp.float32),        # BN scale
            jax.ShapeDtypeStruct((1, f_out), jnp.float32),        # BN shift
        ),
        grid_spec=pltpu.PrefetchScalarGridSpec(
            num_scalar_prefetch=1,
            grid=grid,
            in_specs=[
                pl.BlockSpec((tile_n, f_in), lambda i, n: (i, 0)),   # x  (streamed)
                pl.BlockSpec((1, f_in), lambda i, n: (0, 0)),        # scale_in (resident)
                pl.BlockSpec((1, f_in), lambda i, n: (0, 0)),        # shift_in
                pl.BlockSpec((f_in, f_out), lambda i, n: (0, 0)),    # W (resident, bf16)
                pl.BlockSpec((1, f_out), lambda i, n: (0, 0)),       # b
                pl.BlockSpec((1, f_out), lambda i, n: (0, 0)),       # gamma
                pl.BlockSpec((1, f_out), lambda i, n: (0, 0)),       # beta
            ],
            out_specs=(
                pl.BlockSpec((tile_n, f_out), lambda i, n: (i, 0)),  # y (streamed)
                pl.BlockSpec((1, f_out), lambda i, n: (0, 0)),       # scale
                pl.BlockSpec((1, f_out), lambda i, n: (0, 0)),       # shift
            ),
            scratch_shapes=[
                pltpu.VMEM((1, f_out), jnp.float32),                 # sum
                pltpu.VMEM((1, f_out), jnp.float32),                 # sum of squares
            ],
        ),
        compiler_params=pltpu.CompilerParams(
            # Sequential: per-feature stats accumulate across row tiles.
            dimension_semantics=("arbitrary",),
            vmem_limit_bytes=_vmem_limit(streamed, resident),
        ),
        cost_estimate=pl.CostEstimate(
            flops=2 * n_pad * f_in * f_out,
            transcendentals=f_out,
            bytes_accessed=bytes_hbm,
        ),
    )(n_rows, x, scale_in, shift_in, w, b, gamma, beta)


def _final_layer(x, scale_in, shift_in, w, b, *, normalize_input, tile_n):
    n_pad, f_in = x.shape
    f_out = w.shape[1]
    grid = (n_pad // tile_n,)

    streamed = tile_n * f_in * x.dtype.itemsize + tile_n * f_out * 4
    resident = f_in * f_out * 2 + (2 * f_in + f_out) * 4
    bytes_hbm = (n_pad * f_in * x.dtype.itemsize + n_pad * f_out * 4 +
                 f_in * f_out * 2 + (2 * f_in + f_out) * 4)

    kernel = functools.partial(_final_layer_kernel, normalize_input)
    return pl.pallas_call(
        kernel,
        out_shape=jax.ShapeDtypeStruct((n_pad, f_out), jnp.float32),
        grid_spec=pltpu.PrefetchScalarGridSpec(
            num_scalar_prefetch=0,
            grid=grid,
            in_specs=[
                pl.BlockSpec((tile_n, f_in), lambda i: (i, 0)),
                pl.BlockSpec((1, f_in), lambda i: (0, 0)),
                pl.BlockSpec((1, f_in), lambda i: (0, 0)),
                pl.BlockSpec((f_in, f_out), lambda i: (0, 0)),
                pl.BlockSpec((1, f_out), lambda i: (0, 0)),
            ],
            out_specs=pl.BlockSpec((tile_n, f_out), lambda i: (i, 0)),
        ),
        compiler_params=pltpu.CompilerParams(
            # Independent row tiles -> shard across TensorCores (v7x megacore).
            dimension_semantics=("parallel",),
            vmem_limit_bytes=_vmem_limit(streamed, resident),
        ),
        cost_estimate=pl.CostEstimate(
            flops=2 * n_pad * f_in * f_out,
            transcendentals=0,
            bytes_accessed=bytes_hbm,
        ),
    )(x, scale_in, shift_in, w, b)


# ----------------------------------------------------------------------------
# MLP forward (padding / layer chaining are plain JAX glue)
# ----------------------------------------------------------------------------
def _pad2(a, rows, cols):
    return jnp.pad(a, ((0, rows - a.shape[0]), (0, cols - a.shape[1])))


def _pad_vec(v, cols):
    return jnp.pad(v.reshape(1, -1), ((0, 0), (0, cols - v.shape[0])))


@functools.partial(jax.jit, static_argnames=("tile_n",))
def mlp_forward(params, feat, tile_n=None):
    n, in_feats = feat.shape
    n_layers = len(params)
    n_classes = params[-1]["w"].shape[1]

    if tile_n is None:
        # Generation-portable default; v6e/v5e (128 MiB VMEM) can go 2-4x larger.
        tile_n = 512
    tile_n = max(_SUBLANE,
                 _round_up(min(tile_n, _round_up(n, _SUBLANE)), _SUBLANE))
    n_pad = _round_up(n, tile_n)

    n_rows = jnp.full((1,), n, dtype=jnp.int32)   # true batch size (scalar prefetch)

    d_in_pad = _round_up(in_feats, _LANE)
    h = _pad2(feat.astype(jnp.float32), n_pad, d_in_pad)
    scale = jnp.ones((1, d_in_pad), jnp.float32)   # unused for the first layer
    shift = jnp.zeros((1, d_in_pad), jnp.float32)

    out = None
    for i, p in enumerate(params):
        d_out = p["w"].shape[1]
        d_out_pad = _round_up(d_out, _LANE)
        w = _pad2(p["w"], d_in_pad, d_out_pad).astype(jnp.bfloat16)
        b = _pad_vec(p["b"], d_out_pad)
        if i < n_layers - 1:
            gamma = _pad_vec(p["gamma"], d_out_pad)
            beta = _pad_vec(p["beta"], d_out_pad)
            h, scale, shift = _hidden_layer(
                h, scale, shift, w, b, gamma, beta, n_rows,
                normalize_input=(i > 0), tile_n=tile_n)
        else:
            out = _final_layer(h, scale, shift, w, b,
                               normalize_input=(i > 0), tile_n=tile_n)
        d_in_pad = d_out_pad

    return out[:n, :n_classes]


# ----------------------------------------------------------------------------
# Parameter init + references
# ----------------------------------------------------------------------------
def init_mlp_params(key, in_feats, n_classes, n_layers, n_hidden):
    """nn.Linear-style init (uniform +/- 1/sqrt(fan_in)); BN gamma=1, beta=0."""
    params = []
    for i in range(n_layers):
        d_in = n_hidden if i > 0 else in_feats
        d_out = n_hidden if i < n_layers - 1 else n_classes
        key, kw, kb = jax.random.split(key, 3)
        bound = 1.0 / jnp.sqrt(d_in)
        w = jax.random.uniform(kw, (d_in, d_out), jnp.float32, -bound, bound)
        b = jax.random.uniform(kb, (d_out,), jnp.float32, -bound, bound)
        layer = {"w": w, "b": b}
        if i < n_layers - 1:
            layer["gamma"] = jnp.ones((d_out,), jnp.float32)
            layer["beta"] = jnp.zeros((d_out,), jnp.float32)
        params.append(layer)
    return params


def mlp_forward_ref(params, feat):
    """Pure-JAX reference mirroring the kernel numerics (bf16 MXU inputs,
    f32 accumulation, bf16 intermediate pre-activations, sum/sumsq BN stats)."""
    h = feat.astype(jnp.float32)
    n = feat.shape[0]
    for p in params[:-1]:
        y = jnp.dot(h.astype(jnp.bfloat16), p["w"].astype(jnp.bfloat16),
                    preferred_element_type=jnp.float32) + p["b"]
        mean = jnp.sum(y, axis=0, keepdims=True) / n
        var = jnp.maximum(jnp.sum(y * y, axis=0, keepdims=True) / n - mean * mean, 0.0)
        scale = p["gamma"] * jax.lax.rsqrt(var + BN_EPS)
        shift = p["beta"] - mean * scale
        y = y.astype(jnp.bfloat16)                      # storage precision
        h = jnp.maximum(y.astype(jnp.float32) * scale + shift, 0.0)
    p = params[-1]
    return jnp.dot(h.astype(jnp.bfloat16), p["w"].astype(jnp.bfloat16),
                   preferred_element_type=jnp.float32) + p["b"]


def mlp_forward_ref_f32(params, feat):
    """Full-f32 reference matching the original PyTorch semantics exactly."""
    h = feat
    for p in params[:-1]:
        y = h @ p["w"] + p["b"]
        mean = jnp.mean(y, axis=0, keepdims=True)
        var = jnp.mean((y - mean) ** 2, axis=0, keepdims=True)
        h = jnp.maximum((y - mean) * jax.lax.rsqrt(var + BN_EPS) * p["gamma"]
                        + p["beta"], 0.0)
    return h @ params[-1]["w"] + params[-1]["b"]


if __name__ == "__main__":
    # Small synthetic problem: batch=300 (non-multiple of the tile -> exercises
    # row masking), in_feats=16, hidden=32, classes=8, 3 layers.
    N, IN_FEATS, N_HIDDEN, N_CLASSES, N_LAYERS = 300, 16, 32, 8, 3

    key = jax.random.PRNGKey(0)
    k_x, k_p = jax.random.split(key)
    x = jax.random.normal(k_x, (N, IN_FEATS), jnp.float32)
    params = init_mlp_params(k_p, IN_FEATS, N_CLASSES, N_LAYERS, N_HIDDEN)

    # tile_n=128 -> 3 row tiles: exercises the grid, the streamed pipeline and
    # the cross-tile BN statistics accumulation.
    out = mlp_forward(params, x, tile_n=128)
    out = jax.block_until_ready(out)
    assert out.shape == (N, N_CLASSES)

    # Tight check against a reference with matching numerics.
    ref = mlp_forward_ref(params, x)
    assert jnp.allclose(out, ref, atol=1e-3, rtol=1e-3), \
        "mismatch vs matching-numerics JAX reference"

    # Loose sanity check against the exact f32 PyTorch-semantics reference
    # (bf16 MXU inputs are the deliberate perf tradeoff).
    ref32 = mlp_forward_ref_f32(params, x)
    assert jnp.allclose(out, ref32, atol=0.2, rtol=0.1), \
        "too far from f32 reference"

    print("KERNEL_OK")
</pallas_src>

<mosaic_0001>
module attributes {stable_mosaic.version = 11 : i64} {
  func.func @_final_layer_kernel(%arg0: i32, %arg1: memref<128x128xbf16, #tpu.memory_space<vmem>>, %arg2: memref<1x128xf32, #tpu.memory_space<vmem>>, %arg3: memref<1x128xf32, #tpu.memory_space<vmem>>, %arg4: memref<128x128xbf16, #tpu.memory_space<vmem>>, %arg5: memref<1x128xf32, #tpu.memory_space<vmem>>, %arg6: memref<128x128xf32, #tpu.memory_space<vmem>>) attributes {dimension_semantics = [#tpu.dimension_semantics<parallel>], iteration_bounds = array<i64: 3>, scalar_prefetch = 0 : i64, scratch_operands = 0 : i64, tpu.core_type = #tpu.core_type<tc>, window_params = [{transform_indices = @transform_0, window_bounds = array<i64: 128, 128>}, {pipeline_mode = #tpu.pipeline_mode<synchronous>, transform_indices = @transform_1, window_bounds = array<i64: 1, 128>}, {pipeline_mode = #tpu.pipeline_mode<synchronous>, transform_indices = @transform_2, window_bounds = array<i64: 1, 128>}, {pipeline_mode = #tpu.pipeline_mode<synchronous>, transform_indices = @transform_3, window_bounds = array<i64: 128, 128>}, {pipeline_mode = #tpu.pipeline_mode<synchronous>, transform_indices = @transform_4, window_bounds = array<i64: 1, 128>}, {transform_indices = @transform_5, window_bounds = array<i64: 128, 128>}]} {
    %c0 = arith.constant 0 : index
    %c0_0 = arith.constant 0 : index
    %0 = vector.load %arg1[%c0, %c0_0] : memref<128x128xbf16, #tpu.memory_space<vmem>>, vector<128x128xbf16>
    %1 = arith.extf %0 : vector<128x128xbf16> to vector<128x128xf32>
    %c0_1 = arith.constant 0 : index
    %c0_2 = arith.constant 0 : index
    %2 = vector.load %arg2[%c0_1, %c0_2] : memref<1x128xf32, #tpu.memory_space<vmem>>, vector<1x128xf32>
    %3 = vector.broadcast %2 : vector<1x128xf32> to vector<128x128xf32>
    %4 = arith.mulf %1, %3 : vector<128x128xf32>
    %c0_3 = arith.constant 0 : index
    %c0_4 = arith.constant 0 : index
    %5 = vector.load %arg3[%c0_3, %c0_4] : memref<1x128xf32, #tpu.memory_space<vmem>>, vector<1x128xf32>
    %6 = vector.broadcast %5 : vector<1x128xf32> to vector<128x128xf32>
    %7 = arith.addf %4, %6 : vector<128x128xf32>
    %cst = arith.constant 0.000000e+00 : f32
    %8 = vector.broadcast %cst : f32 to vector<128x128xf32>
    %9 = arith.maximumf %7, %8 : vector<128x128xf32>
    %10 = arith.truncf %9 : vector<128x128xf32> to vector<128x128xbf16>
    %c0_5 = arith.constant 0 : index
    %c0_6 = arith.constant 0 : index
    %11 = vector.load %arg4[%c0_5, %c0_6] : memref<128x128xbf16, #tpu.memory_space<vmem>>, vector<128x128xbf16>
    %cst_7 = arith.constant dense<0.000000e+00> : vector<128x128xf32>
    %12 = tpu.matmul %10, %11, %cst_7 {dimension_numbers = #tpu.dot_dimension_numbers<[1], [0], [0], [1], [0, 0, 1, 1], [], []>} : vector<128x128xbf16>, vector<128x128xbf16>, vector<128x128xf32> -> vector<128x128xf32>
    %c0_8 = arith.constant 0 : index
    %c0_9 = arith.constant 0 : index
    %13 = vector.load %arg5[%c0_8, %c0_9] : memref<1x128xf32, #tpu.memory_space<vmem>>, vector<1x128xf32>
    %14 = vector.broadcast %13 : vector<1x128xf32> to vector<128x128xf32>
    %15 = arith.addf %12, %14 : vector<128x128xf32>
    %c0_10 = arith.constant 0 : index
    %c0_11 = arith.constant 0 : index
    %16 = vector.load %arg6[%c0_10, %c0_11] : memref<128x128xf32, #tpu.memory_space<vmem>>, vector<128x128xf32>
    tpu.vector_store %arg6[%c0_10, %c0_11], %15 {strides = array<i32>} : memref<128x128xf32, #tpu.memory_space<vmem>>, vector<128x128xf32>,
    return
  }
  func.func @transform_0(%arg0: i32) -> (i32, i32) {
    %c0_i32 = arith.constant 0 : i32
    %c0_i32_0 = arith.constant 0 : i32
    return %arg0, %c0_i32 : i32, i32
  }
  func.func @transform_1(%arg0: i32) -> (i32, i32) {
    %c0_i32 = arith.constant 0 : i32
    %c0_i32_0 = arith.constant 0 : i32
    %c0_i32_1 = arith.constant 0 : i32
    return %c0_i32, %c0_i32_0 : i32, i32
  }
  func.func @transform_2(%arg0: i32) -> (i32, i32) {
    %c0_i32 = arith.constant 0 : i32
    %c0_i32_0 = arith.constant 0 : i32
    %c0_i32_1 = arith.constant 0 : i32
    return %c0_i32, %c0_i32_0 : i32, i32
  }
  func.func @transform_3(%arg0: i32) -> (i32, i32) {
    %c0_i32 = arith.constant 0 : i32
    %c0_i32_0 = arith.constant 0 : i32
    %c0_i32_1 = arith.constant 0 : i32
    return %c0_i32, %c0_i32_0 : i32, i32
  }
  func.func @transform_4(%arg0: i32) -> (i32, i32) {
    %c0_i32 = arith.constant 0 : i32
    %c0_i32_0 = arith.constant 0 : i32
    %c0_i32_1 = arith.constant 0 : i32
    return %c0_i32, %c0_i32_0 : i32, i32
  }
  func.func @transform_5(%arg0: i32) -> (i32, i32) {
    %c0_i32 = arith.constant 0 : i32
    %c0_i32_0 = arith.constant 0 : i32
    return %arg0, %c0_i32 : i32, i32
  }
}

module attributes {stable_mosaic.version = 11 : i64} {
  func.func @_hidden_layer_kernel(%arg0: i32, %arg1: memref<1xi32, #tpu.memory_space<smem>>, %arg2: memref<128x128xbf16, #tpu.memory_space<vmem>>, %arg3: memref<1x128xf32, #tpu.memory_space<vmem>>, %arg4: memref<1x128xf32, #tpu.memory_space<vmem>>, %arg5: memref<128x128xbf16, #tpu.memory_space<vmem>>, %arg6: memref<1x128xf32, #tpu.memory_space<vmem>>, %arg7: memref<1x128xf32, #tpu.memory_space<vmem>>, %arg8: memref<1x128xf32, #tpu.memory_space<vmem>>, %arg9: memref<128x128xbf16, #tpu.memory_space<vmem>>, %arg10: memref<1x128xf32, #tpu.memory_space<vmem>>, %arg11: memref<1x128xf32, #tpu.memory_space<vmem>>, %arg12: memref<1x128xf32, #tpu.memory_space<vmem>>, %arg13: memref<1x128xf32, #tpu.memory_space<vmem>>) attributes {dimension_semantics = [#tpu.dimension_semantics<arbitrary>], iteration_bounds = array<i64: 3>, scalar_prefetch = 1 : i64, scratch_operands = 2 : i64, tpu.core_type = #tpu.core_type<tc>, window_params = [{transform_indices = @transform_0, window_bounds = array<i64: 128, 128>}, {pipeline_mode = #tpu.pipeline_mode<synchronous>, transform_indices = @transform_1, window_bounds = array<i64: 1, 128>}, {pipeline_mode = #tpu.pipeline_mode<synchronous>, transform_indices = @transform_2, window_bounds = array<i64: 1, 128>}, {pipeline_mode = #tpu.pipeline_mode<synchronous>, transform_indices = @transform_3, window_bounds = array<i64: 128, 128>}, {pipeline_mode = #tpu.pipeline_mode<synchronous>, transform_indices = @transform_4, window_bounds = array<i64: 1, 128>}, {pipeline_mode = #tpu.pipeline_mode<synchronous>, transform_indices = @transform_5, window_bounds = array<i64: 1, 128>}, {pipeline_mode = #tpu.pipeline_mode<synchronous>, transform_indices = @transform_6, window_bounds = array<i64: 1, 128>}, {transform_indices = @transform_7, window_bounds = array<i64: 128, 128>}, {pipeline_mode = #tpu.pipeline_mode<synchronous>, transform_indices = @transform_8, window_bounds = array<i64: 1, 128>}, {pipeline_mode = #tpu.pipeline_mode<synchronous>, transform_indices = @transform_9, window_bounds = array<i64: 1, 128>}]} {
    %c0_i32 = arith.constant 0 : i32
    %0 = arith.cmpi eq, %arg0, %c0_i32 : i32
    %1 = arith.extui %0 : i1 to i32
    %c0_i32_0 = arith.constant 0 : i32
    %2 = arith.cmpi ne, %1, %c0_i32_0 : i32
    scf.if %2 {
      %cst_26 = arith.constant 0.000000e+00 : f32
      %46 = vector.broadcast %cst_26 : f32 to vector<1x128xf32>
      %c0_27 = arith.constant 0 : index
      %c0_28 = arith.constant 0 : index
      %47 = vector.load %arg12[%c0_27, %c0_28] : memref<1x128xf32, #tpu.memory_space<vmem>>, vector<1x128xf32>
      tpu.vector_store %arg12[%c0_27, %c0_28], %46 {strides = array<i32>} : memref<1x128xf32, #tpu.memory_space<vmem>>, vector<1x128xf32>,
      %cst_29 = arith.constant 0.000000e+00 : f32
      %48 = vector.broadcast %cst_29 : f32 to vector<1x128xf32>
      %c0_30 = arith.constant 0 : index
      %c0_31 = arith.constant 0 : index
      %49 = vector.load %arg13[%c0_30, %c0_31] : memref<1x128xf32, #tpu.memory_space<vmem>>, vector<1x128xf32>
      tpu.vector_store %arg13[%c0_30, %c0_31], %48 {strides = array<i32>} : memref<1x128xf32, #tpu.memory_space<vmem>>, vector<1x128xf32>,
    } else {
    }
    %c0 = arith.constant 0 : index
    %c0_1 = arith.constant 0 : index
    %3 = vector.load %arg2[%c0, %c0_1] : memref<128x128xbf16, #tpu.memory_space<vmem>>, vector<128x128xbf16>
    %4 = arith.extf %3 : vector<128x128xbf16> to vector<128x128xf32>
    %c0_2 = arith.constant 0 : index
    %c0_3 = arith.constant 0 : index
    %5 = vector.load %arg3[%c0_2, %c0_3] : memref<1x128xf32, #tpu.memory_space<vmem>>, vector<1x128xf32>
    %6 = vector.broadcast %5 : vector<1x128xf32> to vector<128x128xf32>
    %7 = arith.mulf %4, %6 : vector<128x128xf32>
    %c0_4 = arith.constant 0 : index
    %c0_5 = arith.constant 0 : index
    %8 = vector.load %arg4[%c0_4, %c0_5] : memref<1x128xf32, #tpu.memory_space<vmem>>, vector<1x128xf32>
    %9 = vector.broadcast %8 : vector<1x128xf32> to vector<128x128xf32>
    %10 = arith.addf %7, %9 : vector<128x128xf32>
    %cst = arith.constant 0.000000e+00 : f32
    %11 = vector.broadcast %cst : f32 to vector<128x128xf32>
    %12 = arith.maximumf %10, %11 : vector<128x128xf32>
    %13 = arith.truncf %12 : vector<128x128xf32> to vector<128x128xbf16>
    %c0_6 = arith.constant 0 : index
    %c0_7 = arith.constant 0 : index
    %14 = vector.load %arg5[%c0_6, %c0_7] : memref<128x128xbf16, #tpu.memory_space<vmem>>, vector<128x128xbf16>
    %cst_8 = arith.constant dense<0.000000e+00> : vector<128x128xf32>
    %15 = tpu.matmul %13, %14, %cst_8 {dimension_numbers = #tpu.dot_dimension_numbers<[1], [0], [0], [1], [0, 0, 1, 1], [], []>} : vector<128x128xbf16>, vector<128x128xbf16>, vector<128x128xf32> -> vector<128x128xf32>
    %c0_9 = arith.constant 0 : index
    %c0_10 = arith.constant 0 : index
    %16 = vector.load %arg6[%c0_9, %c0_10] : memref<1x128xf32, #tpu.memory_space<vmem>>, vector<1x128xf32>
    %17 = vector.broadcast %16 : vector<1x128xf32> to vector<128x128xf32>
    %18 = arith.addf %15, %17 : vector<128x128xf32>
    %19 = arith.truncf %18 : vector<128x128xf32> to vector<128x128xbf16>
    %c0_11 = arith.constant 0 : index
    %c0_12 = arith.constant 0 : index
    %20 = vector.load %arg9[%c0_11, %c0_12] : memref<128x128xbf16, #tpu.memory_space<vmem>>, vector<128x128xbf16>
    tpu.vector_store %arg9[%c0_11, %c0_12], %19 {strides = array<i32>} : memref<128x128xbf16, #tpu.memory_space<vmem>>, vector<128x128xbf16>,
    %c128_i32 = arith.constant 128 : i32
    %21 = arith.muli %arg0, %c128_i32 : i32
    %22 = tpu.iota {dimensions = array<i32: 0>} : vector<128x1xi32>
    %23 = vector.broadcast %21 : i32 to vector<128x1xi32>
    %24 = arith.addi %23, %22 : vector<128x1xi32>
    %c0_13 = arith.constant 0 : index
    %25 = memref.load %arg1[%c0_13] : memref<1xi32, #tpu.memory_space<smem>>
    %26 = vector.broadcast %25 : i32 to vector<128x1xi32>
    %27 = arith.cmpi slt, %24, %26 : vector<128x1xi32>
    %cst_14 = arith.constant 0.000000e+00 : f32
    %28 = vector.shape_cast %27 : vector<128x1xi1> to vector<128x1xi1>
    %29 = vector.broadcast %28 : vector<128x1xi1> to vector<128x128xi1>
    %30 = vector.broadcast %cst_14 : f32 to vector<128x128xf32>
    %31 = arith.select %29, %18, %30 : vector<128x128xi1>, vector<128x128xf32>
    %c0_15 = arith.constant 0 : index
    %c0_16 = arith.constant 0 : index
    %32 = vector.load %arg12[%c0_15, %c0_16] : memref<1x128xf32, #tpu.memory_space<vmem>>, vector<1x128xf32>
    %cst_17 = arith.constant dense<0.000000e+00> : vector<128xf32>
    %33 = vector.multi_reduction <add>, %31, %cst_17 [0] : vector<128x128xf32> to vector<128xf32>
    %34 = vector.shape_cast %33 : vector<128xf32> to vector<1x128xf32>
    %35 = arith.addf %32, %34 : vector<1x128xf32>
    %c0_18 = arith.constant 0 : index
    %c0_19 = arith.constant 0 : index
    %36 = vector.load %arg12[%c0_18, %c0_19] : memref<1x128xf32, #tpu.memory_space<vmem>>, vector<1x128xf32>
    tpu.vector_store %arg12[%c0_18, %c0_19], %35 {strides = array<i32>} : memref<1x128xf32, #tpu.memory_space<vmem>>, vector<1x128xf32>,
    %c0_20 = arith.constant 0 : index
    %c0_21 = arith.constant 0 : index
    %37 = vector.load %arg13[%c0_20, %c0_21] : memref<1x128xf32, #tpu.memory_space<vmem>>, vector<1x128xf32>
    %38 = arith.mulf %31, %31 : vector<128x128xf32>
    %cst_22 = arith.constant dense<0.000000e+00> : vector<128xf32>
    %39 = vector.multi_reduction <add>, %38, %cst_22 [0] : vector<128x128xf32> to vector<128xf32>
    %40 = vector.shape_cast %39 : vector<128xf32> to vector<1x128xf32>
    %41 = arith.addf %37, %40 : vector<1x128xf32>
    %c0_23 = arith.constant 0 : index
    %c0_24 = arith.constant 0 : index
    %42 = vector.load %arg13[%c0_23, %c0_24] : memref<1x128xf32, #tpu.memory_space<vmem>>, vector<1x128xf32>
    tpu.vector_store %arg13[%c0_23, %c0_24], %41 {strides = array<i32>} : memref<1x128xf32, #tpu.memory_space<vmem>>, vector<1x128xf32>,
    %c2_i32 = arith.constant 2 : i32
    %43 = arith.cmpi eq, %arg0, %c2_i32 : i32
    %44 = arith.extui %43 : i1 to i32
    %c0_i32_25 = arith.constant 0 : i32
    %45 = arith.cmpi ne, %44, %c0_i32_25 : i32
    scf.if %45 {
      %c0_26 = arith.constant 0 : index
      %46 = memref.load %arg1[%c0_26] : memref<1xi32, #tpu.memory_space<smem>>
      %47 = arith.sitofp %46 : i32 to f32
      %cst_27 = arith.constant 1.000000e+00 : f32
      %48 = arith.divf %cst_27, %47 : f32
      %c0_28 = arith.constant 0 : index
      %c0_29 = arith.constant 0 : index
      %49 = vector.load %arg12[%c0_28, %c0_29] : memref<1x128xf32, #tpu.memory_space<vmem>>, vector<1x128xf32>
      %50 = vector.broadcast %48 : f32 to vector<1x128xf32>
      %51 = arith.mulf %49, %50 : vector<1x128xf32>
      %c0_30 = arith.constant 0 : index
      %c0_31 = arith.constant 0 : index
      %52 = vector.load %arg13[%c0_30, %c0_31] : memref<1x128xf32, #tpu.memory_space<vmem>>, vector<1x128xf32>
      %53 = vector.broadcast %48 : f32 to vector<1x128xf32>
      %54 = arith.mulf %52, %53 : vector<1x128xf32>
      %55 = arith.mulf %51, %51 : vector<1x128xf32>
      %56 = arith.subf %54, %55 : vector<1x128xf32>
      %cst_32 = arith.constant 0.000000e+00 : f32
      %57 = vector.broadcast %cst_32 : f32 to vector<1x128xf32>
      %58 = arith.maximumf %56, %57 : vector<1x128xf32>
      %c0_33 = arith.constant 0 : index
      %c0_34 = arith.constant 0 : index
      %59 = vector.load %arg7[%c0_33, %c0_34] : memref<1x128xf32, #tpu.memory_space<vmem>>, vector<1x128xf32>
      %cst_35 = arith.constant 9.99999974E-6 : f32
      %60 = vector.broadcast %cst_35 : f32 to vector<1x128xf32>
      %61 = arith.addf %58, %60 : vector<1x128xf32>
      %62 = math.rsqrt %61 : vector<1x128xf32>
      %63 = arith.mulf %59, %62 : vector<1x128xf32>
      %c0_36 = arith.constant 0 : index
      %c0_37 = arith.constant 0 : index
      %64 = vector.load %arg10[%c0_36, %c0_37] : memref<1x128xf32, #tpu.memory_space<vmem>>, vector<1x128xf32>
      tpu.vector_store %arg10[%c0_36, %c0_37], %63 {strides = array<i32>} : memref<1x128xf32, #tpu.memory_space<vmem>>, vector<1x128xf32>,
      %c0_38 = arith.constant 0 : index
      %c0_39 = arith.constant 0 : index
      %65 = vector.load %arg8[%c0_38, %c0_39] : memref<1x128xf32, #tpu.memory_space<vmem>>, vector<1x128xf32>
      %66 = arith.mulf %51, %63 : vector<1x128xf32>
      %67 = arith.subf %65, %66 : vector<1x128xf32>
      %c0_40 = arith.constant 0 : index
      %c0_41 = arith.constant 0 : index
      %68 = vector.load %arg11[%c0_40, %c0_41] : memref<1x128xf32, #tpu.memory_space<vmem>>, vector<1x128xf32>
      tpu.vector_store %arg11[%c0_40, %c0_41], %67 {strides = array<i32>} : memref<1x128xf32, #tpu.memory_space<vmem>>, vector<1x128xf32>,
    } else {
    }
    return
  }
  func.func @transform_0(%arg0: i32, %arg1: memref<1xi32, #tpu.memory_space<smem>>) -> (i32, i32) {
    %c0_i32 = arith.constant 0 : i32
    %c0_i32_0 = arith.constant 0 : i32
    return %arg0, %c0_i32 : i32, i32
  }
  func.func @transform_1(%arg0: i32, %arg1: memref<1xi32, #tpu.memory_space<smem>>) -> (i32, i32) {
    %c0_i32 = arith.constant 0 : i32
    %c0_i32_0 = arith.constant 0 : i32
    %c0_i32_1 = arith.constant 0 : i32
    return %c0_i32, %c0_i32_0 : i32, i32
  }
  func.func @transform_2(%arg0: i32, %arg1: memref<1xi32, #tpu.memory_space<smem>>) -> (i32, i32) {
    %c0_i32 = arith.constant 0 : i32
    %c0_i32_0 = arith.constant 0 : i32
    %c0_i32_1 = arith.constant 0 : i32
    return %c0_i32, %c0_i32_0 : i32, i32
  }
  func.func @transform_3(%arg0: i32, %arg1: memref<1xi32, #tpu.memory_space<smem>>) -> (i32, i32) {
    %c0_i32 = arith.constant 0 : i32
    %c0_i32_0 = arith.constant 0 : i32
    %c0_i32_1 = arith.constant 0 : i32
    return %c0_i32, %c0_i32_0 : i32, i32
  }
  func.func @transform_4(%arg0: i32, %arg1: memref<1xi32, #tpu.memory_space<smem>>) -> (i32, i32) {
    %c0_i32 = arith.constant 0 : i32
    %c0_i32_0 = arith.constant 0 : i32
    %c0_i32_1 = arith.constant 0 : i32
    return %c0_i32, %c0_i32_0 : i32, i32
  }
  func.func @transform_5(%arg0: i32, %arg1: memref<1xi32, #tpu.memory_space<smem>>) -> (i32, i32) {
    %c0_i32 = arith.constant 0 : i32
    %c0_i32_0 = arith.constant 0 : i32
    %c0_i32_1 = arith.constant 0 : i32
    return %c0_i32, %c0_i32_0 : i32, i32
  }
  func.func @transform_6(%arg0: i32, %arg1: memref<1xi32, #tpu.memory_space<smem>>) -> (i32, i32) {
    %c0_i32 = arith.constant 0 : i32
    %c0_i32_0 = arith.constant 0 : i32
    %c0_i32_1 = arith.constant 0 : i32
    return %c0_i32, %c0_i32_0 : i32, i32
  }
  func.func @transform_7(%arg0: i32, %arg1: memref<1xi32, #tpu.memory_space<smem>>) -> (i32, i32) {
    %c0_i32 = arith.constant 0 : i32
    %c0_i32_0 = arith.constant 0 : i32
    return %arg0, %c0_i32 : i32, i32
  }
  func.func @transform_8(%arg0: i32, %arg1: memref<1xi32, #tpu.memory_space<smem>>) -> (i32, i32) {
    %c0_i32 = arith.constant 0 : i32
    %c0_i32_0 = arith.constant 0 : i32
    %c0_i32_1 = arith.constant 0 : i32
    return %c0_i32, %c0_i32_0 : i32, i32
  }
  func.func @transform_9(%arg0: i32, %arg1: memref<1xi32, #tpu.memory_space<smem>>) -> (i32, i32) {
    %c0_i32 = arith.constant 0 : i32
    %c0_i32_0 = arith.constant 0 : i32
    %c0_i32_1 = arith.constant 0 : i32
    return %c0_i32, %c0_i32_0 : i32, i32
  }
}

module attributes {stable_mosaic.version = 11 : i64} {
  func.func @_hidden_layer_kernel(%arg0: i32, %arg1: memref<1xi32, #tpu.memory_space<smem>>, %arg2: memref<128x128xf32, #tpu.memory_space<vmem>>, %arg3: memref<1x128xf32, #tpu.memory_space<vmem>>, %arg4: memref<1x128xf32, #tpu.memory_space<vmem>>, %arg5: memref<128x128xbf16, #tpu.memory_space<vmem>>, %arg6: memref<1x128xf32, #tpu.memory_space<vmem>>, %arg7: memref<1x128xf32, #tpu.memory_space<vmem>>, %arg8: memref<1x128xf32, #tpu.memory_space<vmem>>, %arg9: memref<128x128xbf16, #tpu.memory_space<vmem>>, %arg10: memref<1x128xf32, #tpu.memory_space<vmem>>, %arg11: memref<1x128xf32, #tpu.memory_space<vmem>>, %arg12: memref<1x128xf32, #tpu.memory_space<vmem>>, %arg13: memref<1x128xf32, #tpu.memory_space<vmem>>) attributes {dimension_semantics = [#tpu.dimension_semantics<arbitrary>], iteration_bounds = array<i64: 3>, scalar_prefetch = 1 : i64, scratch_operands = 2 : i64, tpu.core_type = #tpu.core_type<tc>, window_params = [{transform_indices = @transform_0, window_bounds = array<i64: 128, 128>}, {pipeline_mode = #tpu.pipeline_mode<synchronous>, transform_indices = @transform_1, window_bounds = array<i64: 1, 128>}, {pipeline_mode = #tpu.pipeline_mode<synchronous>, transform_indices = @transform_2, window_bounds = array<i64: 1, 128>}, {pipeline_mode = #tpu.pipeline_mode<synchronous>, transform_indices = @transform_3, window_bounds = array<i64: 128, 128>}, {pipeline_mode = #tpu.pipeline_mode<synchronous>, transform_indices = @transform_4, window_bounds = array<i64: 1, 128>}, {pipeline_mode = #tpu.pipeline_mode<synchronous>, transform_indices = @transform_5, window_bounds = array<i64: 1, 128>}, {pipeline_mode = #tpu.pipeline_mode<synchronous>, transform_indices = @transform_6, window_bounds = array<i64: 1, 128>}, {transform_indices = @transform_7, window_bounds = array<i64: 128, 128>}, {pipeline_mode = #tpu.pipeline_mode<synchronous>, transform_indices = @transform_8, window_bounds = array<i64: 1, 128>}, {pipeline_mode = #tpu.pipeline_mode<synchronous>, transform_indices = @transform_9, window_bounds = array<i64: 1, 128>}]} {
    %c0_i32 = arith.constant 0 : i32
    %0 = arith.cmpi eq, %arg0, %c0_i32 : i32
    %1 = arith.extui %0 : i1 to i32
    %c0_i32_0 = arith.constant 0 : i32
    %2 = arith.cmpi ne, %1, %c0_i32_0 : i32
    scf.if %2 {
      %cst_21 = arith.constant 0.000000e+00 : f32
      %37 = vector.broadcast %cst_21 : f32 to vector<1x128xf32>
      %c0_22 = arith.constant 0 : index
      %c0_23 = arith.constant 0 : index
      %38 = vector.load %arg12[%c0_22, %c0_23] : memref<1x128xf32, #tpu.memory_space<vmem>>, vector<1x128xf32>
      tpu.vector_store %arg12[%c0_22, %c0_23], %37 {strides = array<i32>} : memref<1x128xf32, #tpu.memory_space<vmem>>, vector<1x128xf32>,
      %cst_24 = arith.constant 0.000000e+00 : f32
      %39 = vector.broadcast %cst_24 : f32 to vector<1x128xf32>
      %c0_25 = arith.constant 0 : index
      %c0_26 = arith.constant 0 : index
      %40 = vector.load %arg13[%c0_25, %c0_26] : memref<1x128xf32, #tpu.memory_space<vmem>>, vector<1x128xf32>
      tpu.vector_store %arg13[%c0_25, %c0_26], %39 {strides = array<i32>} : memref<1x128xf32, #tpu.memory_space<vmem>>, vector<1x128xf32>,
    } else {
    }
    %c0 = arith.constant 0 : index
    %c0_1 = arith.constant 0 : index
    %3 = vector.load %arg2[%c0, %c0_1] : memref<128x128xf32, #tpu.memory_space<vmem>>, vector<128x128xf32>
    %4 = arith.truncf %3 : vector<128x128xf32> to vector<128x128xbf16>
    %c0_2 = arith.constant 0 : index
    %c0_3 = arith.constant 0 : index
    %5 = vector.load %arg5[%c0_2, %c0_3] : memref<128x128xbf16, #tpu.memory_space<vmem>>, vector<128x128xbf16>
    %cst = arith.constant dense<0.000000e+00> : vector<128x128xf32>
    %6 = tpu.matmul %4, %5, %cst {dimension_numbers = #tpu.dot_dimension_numbers<[1], [0], [0], [1], [0, 0, 1, 1], [], []>} : vector<128x128xbf16>, vector<128x128xbf16>, vector<128x128xf32> -> vector<128x128xf32>
    %c0_4 = arith.constant 0 : index
    %c0_5 = arith.constant 0 : index
    %7 = vector.load %arg6[%c0_4, %c0_5] : memref<1x128xf32, #tpu.memory_space<vmem>>, vector<1x128xf32>
    %8 = vector.broadcast %7 : vector<1x128xf32> to vector<128x128xf32>
    %9 = arith.addf %6, %8 : vector<128x128xf32>
    %10 = arith.truncf %9 : vector<128x128xf32> to vector<128x128xbf16>
    %c0_6 = arith.constant 0 : index
    %c0_7 = arith.constant 0 : index
    %11 = vector.load %arg9[%c0_6, %c0_7] : memref<128x128xbf16, #tpu.memory_space<vmem>>, vector<128x128xbf16>
    tpu.vector_store %arg9[%c0_6, %c0_7], %10 {strides = array<i32>} : memref<128x128xbf16, #tpu.memory_space<vmem>>, vector<128x128xbf16>,
    %c128_i32 = arith.constant 128 : i32
    %12 = arith.muli %arg0, %c128_i32 : i32
    %13 = tpu.iota {dimensions = array<i32: 0>} : vector<128x1xi32>
    %14 = vector.broadcast %12 : i32 to vector<128x1xi32>
    %15 = arith.addi %14, %13 : vector<128x1xi32>
    %c0_8 = arith.constant 0 : index
    %16 = memref.load %arg1[%c0_8] : memref<1xi32, #tpu.memory_space<smem>>
    %17 = vector.broadcast %16 : i32 to vector<128x1xi32>
    %18 = arith.cmpi slt, %15, %17 : vector<128x1xi32>
    %cst_9 = arith.constant 0.000000e+00 : f32
    %19 = vector.shape_cast %18 : vector<128x1xi1> to vector<128x1xi1>
    %20 = vector.broadcast %19 : vector<128x1xi1> to vector<128x128xi1>
    %21 = vector.broadcast %cst_9 : f32 to vector<128x128xf32>
    %22 = arith.select %20, %9, %21 : vector<128x128xi1>, vector<128x128xf32>
    %c0_10 = arith.constant 0 : index
    %c0_11 = arith.constant 0 : index
    %23 = vector.load %arg12[%c0_10, %c0_11] : memref<1x128xf32, #tpu.memory_space<vmem>>, vector<1x128xf32>
    %cst_12 = arith.constant dense<0.000000e+00> : vector<128xf32>
    %24 = vector.multi_reduction <add>, %22, %cst_12 [0] : vector<128x128xf32> to vector<128xf32>
    %25 = vector.shape_cast %24 : vector<128xf32> to vector<1x128xf32>
    %26 = arith.addf %23, %25 : vector<1x128xf32>
    %c0_13 = arith.constant 0 : index
    %c0_14 = arith.constant 0 : index
    %27 = vector.load %arg12[%c0_13, %c0_14] : memref<1x128xf32, #tpu.memory_space<vmem>>, vector<1x128xf32>
    tpu.vector_store %arg12[%c0_13, %c0_14], %26 {strides = array<i32>} : memref<1x128xf32, #tpu.memory_space<vmem>>, vector<1x128xf32>,
    %c0_15 = arith.constant 0 : index
    %c0_16 = arith.constant 0 : index
    %28 = vector.load %arg13[%c0_15, %c0_16] : memref<1x128xf32, #tpu.memory_space<vmem>>, vector<1x128xf32>
    %29 = arith.mulf %22, %22 : vector<128x128xf32>
    %cst_17 = arith.constant dense<0.000000e+00> : vector<128xf32>
    %30 = vector.multi_reduction <add>, %29, %cst_17 [0] : vector<128x128xf32> to vector<128xf32>
    %31 = vector.shape_cast %30 : vector<128xf32> to vector<1x128xf32>
    %32 = arith.addf %28, %31 : vector<1x128xf32>
    %c0_18 = arith.constant 0 : index
    %c0_19 = arith.constant 0 : index
    %33 = vector.load %arg13[%c0_18, %c0_19] : memref<1x128xf32, #tpu.memory_space<vmem>>, vector<1x128xf32>
    tpu.vector_store %arg13[%c0_18, %c0_19], %32 {strides = array<i32>} : memref<1x128xf32, #tpu.memory_space<vmem>>, vector<1x128xf32>,
    %c2_i32 = arith.constant 2 : i32
    %34 = arith.cmpi eq, %arg0, %c2_i32 : i32
    %35 = arith.extui %34 : i1 to i32
    %c0_i32_20 = arith.constant 0 : i32
    %36 = arith.cmpi ne, %35, %c0_i32_20 : i32
    scf.if %36 {
      %c0_21 = arith.constant 0 : index
      %37 = memref.load %arg1[%c0_21] : memref<1xi32, #tpu.memory_space<smem>>
      %38 = arith.sitofp %37 : i32 to f32
      %cst_22 = arith.constant 1.000000e+00 : f32
      %39 = arith.divf %cst_22, %38 : f32
      %c0_23 = arith.constant 0 : index
      %c0_24 = arith.constant 0 : index
      %40 = vector.load %arg12[%c0_23, %c0_24] : memref<1x128xf32, #tpu.memory_space<vmem>>, vector<1x128xf32>
      %41 = vector.broadcast %39 : f32 to vector<1x128xf32>
      %42 = arith.mulf %40, %41 : vector<1x128xf32>
      %c0_25 = arith.constant 0 : index
      %c0_26 = arith.constant 0 : index
      %43 = vector.load %arg13[%c0_25, %c0_26] : memref<1x128xf32, #tpu.memory_space<vmem>>, vector<1x128xf32>
      %44 = vector.broadcast %39 : f32 to vector<1x128xf32>
      %45 = arith.mulf %43, %44 : vector<1x128xf32>
      %46 = arith.mulf %42, %42 : vector<1x128xf32>
      %47 = arith.subf %45, %46 : vector<1x128xf32>
      %cst_27 = arith.constant 0.000000e+00 : f32
      %48 = vector.broadcast %cst_27 : f32 to vector<1x128xf32>
      %49 = arith.maximumf %47, %48 : vector<1x128xf32>
      %c0_28 = arith.constant 0 : index
      %c0_29 = arith.constant 0 : index
      %50 = vector.load %arg7[%c0_28, %c0_29] : memref<1x128xf32, #tpu.memory_space<vmem>>, vector<1x128xf32>
      %cst_30 = arith.constant 9.99999974E-6 : f32
      %51 = vector.broadcast %cst_30 : f32 to vector<1x128xf32>
      %52 = arith.addf %49, %51 : vector<1x128xf32>
      %53 = math.rsqrt %52 : vector<1x128xf32>
      %54 = arith.mulf %50, %53 : vector<1x128xf32>
      %c0_31 = arith.constant 0 : index
      %c0_32 = arith.constant 0 : index
      %55 = vector.load %arg10[%c0_31, %c0_32] : memref<1x128xf32, #tpu.memory_space<vmem>>, vector<1x128xf32>
      tpu.vector_store %arg10[%c0_31, %c0_32], %54 {strides = array<i32>} : memref<1x128xf32, #tpu.memory_space<vmem>>, vector<1x128xf32>,
      %c0_33 = arith.constant 0 : index
      %c0_34 = arith.constant 0 : index
      %56 = vector.load %arg8[%c0_33, %c0_34] : memref<1x128xf32, #tpu.memory_space<vmem>>, vector<1x128xf32>
      %57 = arith.mulf %42, %54 : vector<1x128xf32>
      %58 = arith.subf %56, %57 : vector<1x128xf32>
      %c0_35 = arith.constant 0 : index
      %c0_36 = arith.constant 0 : index
      %59 = vector.load %arg11[%c0_35, %c0_36] : memref<1x128xf32, #tpu.memory_space<vmem>>, vector<1x128xf32>
      tpu.vector_store %arg11[%c0_35, %c0_36], %58 {strides = array<i32>} : memref<1x128xf32, #tpu.memory_space<vmem>>, vector<1x128xf32>,
    } else {
    }
    return
  }
  func.func @transform_0(%arg0: i32, %arg1: memref<1xi32, #tpu.memory_space<smem>>) -> (i32, i32) {
    %c0_i32 = arith.constant 0 : i32
    %c0_i32_0 = arith.constant 0 : i32
    return %arg0, %c0_i32 : i32, i32
  }
  func.func @transform_1(%arg0: i32, %arg1: memref<1xi32, #tpu.memory_space<smem>>) -> (i32, i32) {
    %c0_i32 = arith.constant 0 : i32
    %c0_i32_0 = arith.constant 0 : i32
    %c0_i32_1 = arith.constant 0 : i32
    return %c0_i32, %c0_i32_0 : i32, i32
  }
  func.func @transform_2(%arg0: i32, %arg1: memref<1xi32, #tpu.memory_space<smem>>) -> (i32, i32) {
    %c0_i32 = arith.constant 0 : i32
    %c0_i32_0 = arith.constant 0 : i32
    %c0_i32_1 = arith.constant 0 : i32
    return %c0_i32, %c0_i32_0 : i32, i32
  }
  func.func @transform_3(%arg0: i32, %arg1: memref<1xi32, #tpu.memory_space<smem>>) -> (i32, i32) {
    %c0_i32 = arith.constant 0 : i32
    %c0_i32_0 = arith.constant 0 : i32
    %c0_i32_1 = arith.constant 0 : i32
    return %c0_i32, %c0_i32_0 : i32, i32
  }
  func.func @transform_4(%arg0: i32, %arg1: memref<1xi32, #tpu.memory_space<smem>>) -> (i32, i32) {
    %c0_i32 = arith.constant 0 : i32
    %c0_i32_0 = arith.constant 0 : i32
    %c0_i32_1 = arith.constant 0 : i32
    return %c0_i32, %c0_i32_0 : i32, i32
  }
  func.func @transform_5(%arg0: i32, %arg1: memref<1xi32, #tpu.memory_space<smem>>) -> (i32, i32) {
    %c0_i32 = arith.constant 0 : i32
    %c0_i32_0 = arith.constant 0 : i32
    %c0_i32_1 = arith.constant 0 : i32
    return %c0_i32, %c0_i32_0 : i32, i32
  }
  func.func @transform_6(%arg0: i32, %arg1: memref<1xi32, #tpu.memory_space<smem>>) -> (i32, i32) {
    %c0_i32 = arith.constant 0 : i32
    %c0_i32_0 = arith.constant 0 : i32
    %c0_i32_1 = arith.constant 0 : i32
    return %c0_i32, %c0_i32_0 : i32, i32
  }
  func.func @transform_7(%arg0: i32, %arg1: memref<1xi32, #tpu.memory_space<smem>>) -> (i32, i32) {
    %c0_i32 = arith.constant 0 : i32
    %c0_i32_0 = arith.constant 0 : i32
    return %arg0, %c0_i32 : i32, i32
  }
  func.func @transform_8(%arg0: i32, %arg1: memref<1xi32, #tpu.memory_space<smem>>) -> (i32, i32) {
    %c0_i32 = arith.constant 0 : i32
    %c0_i32_0 = arith.constant 0 : i32
    %c0_i32_1 = arith.constant 0 : i32
    return %c0_i32, %c0_i32_0 : i32, i32
  }
  func.func @transform_9(%arg0: i32, %arg1: memref<1xi32, #tpu.memory_space<smem>>) -> (i32, i32) {
    %c0_i32 = arith.constant 0 : i32
    %c0_i32_0 = arith.constant 0 : i32
    %c0_i32_1 = arith.constant 0 : i32
    return %c0_i32, %c0_i32_0 : i32, i32
  }
}

</mosaic_0001>

<llo_original>
// kernel: mlp_forward.5
$region0: #{mlp_forward.5}
  #allocation0 [shape = 'u32[]', space=smem, size = 0x4, offset = 0x4, fixed_abs, tag = 'smem constant byte address 0x4 - core index']
  #allocation1 [shape = 'u32[72,128]{1,0:T(1,128)}', space=vmem, size = 0x9000, scoped, tag = 'internal scratch']
  %s0 = inlined_call_operand.vmem [shape: bf16[384,128], index: 0, kind: input, shape index: {}]
  %s1 = inlined_call_operand.vmem [shape: f32[1,128], index: 1, kind: input, shape index: {}]
  %s2 = inlined_call_operand.vmem [shape: f32[1,128], index: 2, kind: input, shape index: {}]
  %s3 = inlined_call_operand.vmem [shape: bf16[128,128], index: 3, kind: input, shape index: {}]
  %s4 = inlined_call_operand.vmem [shape: f32[1,128], index: 4, kind: input, shape index: {}]
  %s5 = inlined_call_operand.vmem [shape: f32[384,128], index: 5, kind: output, shape index: {}]
  %s6 = sld [smem:[#allocation0]]
  $region53: #{mlp_forward.5} parent=0
    _
  %s8 = ssub.s32 1, %s6
  %s9 = scalar_select 0, %s8, %s6
  loop: start=0, step=1, limit=5
  $region2: #{mlp_forward.5} parent=0 // loop_pre_header
    _
  $region3: #{mlp_forward.5} parent=0 // loop_header
    %s11 = sphi 0, %s15
    %p12 = scmp.ge.s32.totalorder %s11, 5
    %s21 = sphi 0, %s23
    %s24 = sphi 0, %s21
    %s25 = sphi 0, %s24
    %s41 = sphi 0, %s25
    %s45 = sphi 0, %s45
    %s47 = sphi 0, %s45
    %s48 = sphi 0, %s47
    %s62 = sphi 0, %s48
    %s66 = sphi 0, %s66
    %s68 = sphi 0, %s66
    %s69 = sphi 0, %s68
    %s83 = sphi 0, %s69
    %s87 = sphi 0, %s87
    %s89 = sphi 0, %s87
    %s90 = sphi 0, %s89
    %s104 = sphi 0, %s90
    %s108 = sphi 0, %s108
    %s110 = sphi 0, %s108
    %s111 = sphi 0, %s110
    %s125 = sphi 0, %s111
    %s131 = sphi 0, %s133
    %s134 = sphi 0, %s131
    %s135 = sphi 0, %s134
    %s151 = sphi 0, %s135
  $region4: #{mlp_forward.5} parent=0 // loop_header_branch
    %14 = sbr.rel (%p12) target = $region8
  $region5: #{mlp_forward.5} parent=0 // loop_body
    %s16 = ssub.s32 %s11, 1
    %s17 = ssub.s32 %s11, 2
    %s18 = sadd.s32 %s11, 1
    %s19 = ssub.s32 %s11, %s18
    %p20 = scmp.eq.s32.totalorder %s19, 0
    %s22 = sadd.s32 %s21, 1
    %s23 = scalar_select %p20, %s21, %s22
    %p26 = pneg %p20
    %p27 = scmp.eq.s32.totalorder %s11, 2
    %p28 = por %p26, %p27
    %p29 = scmp.ne.s32.totalorder %s21, %s24
    %p30 = scmp.eq.s32.totalorder %s11, 0
    %p31 = por %p29, %p30
    %p32 = scmp.ne.s32.totalorder %s21, %s24
    %p33 = scmp.eq.s32.totalorder %s16, 2
    %p34 = por %p32, %p33
    %p35 = scmp.ne.s32.totalorder %s24, %s25
    %p36 = scmp.eq.s32.totalorder %s16, 0
    %p37 = por %p35, %p36
    %p38 = scmp.ne.s32.totalorder %s24, %s25
    %p39 = scmp.eq.s32.totalorder %s17, 2
    %p40 = por %p38, %p39
    %p42 = scmp.ne.s32.totalorder %s25, %s41
    %p43 = scmp.eq.s32.totalorder %s17, 0
    %p44 = por %p42, %p43
    %s46 = sadd.s32 %s45, 1
    %p49 = scmp.eq.s32.totalorder %s11, 2
    %p50 = scmp.ne.s32.totalorder %s45, %s47
    %p51 = scmp.eq.s32.totalorder %s11, 0
    %p52 = por %p50, %p51
    %p53 = scmp.ne.s32.totalorder %s45, %s47
    %p54 = scmp.eq.s32.totalorder %s16, 2
    %p55 = por %p53, %p54
    %p56 = scmp.ne.s32.totalorder %s47, %s48
    %p57 = scmp.eq.s32.totalorder %s16, 0
    %p58 = por %p56, %p57
    %p59 = scmp.ne.s32.totalorder %s47, %s48
    %p60 = scmp.eq.s32.totalorder %s17, 2
    %p61 = por %p59, %p60
    %p63 = scmp.ne.s32.totalorder %s48, %s62
    %p64 = scmp.eq.s32.totalorder %s17, 0
    %p65 = por %p63, %p64
    %s67 = sadd.s32 %s66, 1
    %p70 = scmp.eq.s32.totalorder %s11, 2
    %p71 = scmp.ne.s32.totalorder %s66, %s68
    %p72 = scmp.eq.s32.totalorder %s11, 0
    %p73 = por %p71, %p72
    %p74 = scmp.ne.s32.totalorder %s66, %s68
    %p75 = scmp.eq.s32.totalorder %s16, 2
    %p76 = por %p74, %p75
    %p77 = scmp.ne.s32.totalorder %s68, %s69
    %p78 = scmp.eq.s32.totalorder %s16, 0
    %p79 = por %p77, %p78
    %p80 = scmp.ne.s32.totalorder %s68, %s69
    %p81 = scmp.eq.s32.totalorder %s17, 2
    %p82 = por %p80, %p81
    %p84 = scmp.ne.s32.totalorder %s69, %s83
    %p85 = scmp.eq.s32.totalorder %s17, 0
    %p86 = por %p84, %p85
    %s88 = sadd.s32 %s87, 1
    %p91 = scmp.eq.s32.totalorder %s11, 2
    %p92 = scmp.ne.s32.totalorder %s87, %s89
    %p93 = scmp.eq.s32.totalorder %s11, 0
    %p94 = por %p92, %p93
    %p95 = scmp.ne.s32.totalorder %s87, %s89
    %p96 = scmp.eq.s32.totalorder %s16, 2
    %p97 = por %p95, %p96
    %p98 = scmp.ne.s32.totalorder %s89, %s90
    %p99 = scmp.eq.s32.totalorder %s16, 0
    %p100 = por %p98, %p99
    %p101 = scmp.ne.s32.totalorder %s89, %s90
    %p102 = scmp.eq.s32.totalorder %s17, 2
    %p103 = por %p101, %p102
    %p105 = scmp.ne.s32.totalorder %s90, %s104
    %p106 = scmp.eq.s32.totalorder %s17, 0
    %p107 = por %p105, %p106
    %s109 = sadd.s32 %s108, 1
    %p112 = scmp.eq.s32.totalorder %s11, 2
    %p113 = scmp.ne.s32.totalorder %s108, %s110
    %p114 = scmp.eq.s32.totalorder %s11, 0
    %p115 = por %p113, %p114
    %p116 = scmp.ne.s32.totalorder %s108, %s110
    %p117 = scmp.eq.s32.totalorder %s16, 2
    %p118 = por %p116, %p117
    %p119 = scmp.ne.s32.totalorder %s110, %s111
    %p120 = scmp.eq.s32.totalorder %s16, 0
    %p121 = por %p119, %p120
    %p122 = scmp.ne.s32.totalorder %s110, %s111
    %p123 = scmp.eq.s32.totalorder %s17, 2
    %p124 = por %p122, %p123
    %p126 = scmp.ne.s32.totalorder %s111, %s125
    %p127 = scmp.eq.s32.totalorder %s17, 0
    %p128 = por %p126, %p127
    %s129 = ssub.s32 %s11, %s18
    %p130 = scmp.eq.s32.totalorder %s129, 0
    %s132 = sadd.s32 %s131, 1
    %s133 = scalar_select %p130, %s131, %s132
    %p136 = pneg %p130
    %p137 = scmp.eq.s32.totalorder %s11, 2
    %p138 = por %p136, %p137
    %p139 = scmp.ne.s32.totalorder %s131, %s134
    %p140 = scmp.eq.s32.totalorder %s11, 0
    %p141 = por %p139, %p140
    %p142 = scmp.ne.s32.totalorder %s131, %s134
    %p143 = scmp.eq.s32.totalorder %s16, 2
    %p144 = por %p142, %p143
    %p145 = scmp.ne.s32.totalorder %s134, %s135
    %p146 = scmp.eq.s32.totalorder %s16, 0
    %p147 = por %p145, %p146
    %p148 = scmp.ne.s32.totalorder %s134, %s135
    %p149 = scmp.eq.s32.totalorder %s17, 2
    %p150 = por %p148, %p149
    %p152 = scmp.ne.s32.totalorder %s135, %s151
    %p153 = scmp.eq.s32.totalorder %s17, 0
    %p154 = por %p152, %p153
    %p155 = scmp.le.s32.totalorder 1, %s11
    %p156 = scmp.lt.s32.totalorder %s11, 4
    %p157 = pnand %p155, %p156
    %p158 = pneg %p157
    // Predicated region
    $region9: #{mlp_forward.5} parent=5 // pred_check
      _
    $region10: #{mlp_forward.5} parent=5 // pred_check_branch
      %160 = sbr.rel (%p157) target = $region12
    $region11: #{mlp_forward.5} parent=5 // pred_region
      %s161 = ssub.s32 %s11, 1
      // Predicated region
      $region13: #{mlp_forward.5} parent=11 // pred_check
        %p162 = pneg %p58
      $region14: #{mlp_forward.5} parent=11 // pred_check_branch
        %164 = sbr.rel (%p162) target = $region16
      $region15: #{mlp_forward.5} parent=11 // pred_region
        _
      $region16: #{mlp_forward.5} parent=11 // pred_fallthru
        _
      // Predicated region
      $region17: #{mlp_forward.5} parent=11 // pred_check
        %p165 = pneg %p79
      $region18: #{mlp_forward.5} parent=11 // pred_check_branch
        %167 = sbr.rel (%p165) target = $region20
      $region19: #{mlp_forward.5} parent=11 // pred_region
        _
      $region20: #{mlp_forward.5} parent=11 // pred_fallthru
        _
      // Predicated region
      $region21: #{mlp_forward.5} parent=11 // pred_check
        %p168 = pneg %p100
      $region22: #{mlp_forward.5} parent=11 // pred_check_branch
        %170 = sbr.rel (%p168) target = $region24
      $region23: #{mlp_forward.5} parent=11 // pred_region
        _
      $region24: #{mlp_forward.5} parent=11 // pred_fallthru
        _
      // Predicated region
      $region25: #{mlp_forward.5} parent=11 // pred_check
        %p171 = pneg %p121
      $region26: #{mlp_forward.5} parent=11 // pred_check_branch
        %173 = sbr.rel (%p171) target = $region28
      $region27: #{mlp_forward.5} parent=11 // pred_region
        _
      $region28: #{mlp_forward.5} parent=11 // pred_fallthru
        _
    $region12: #{mlp_forward.5} parent=5 // pred_fallthru
      _
    %p174 = scmp.lt.s32.totalorder %s11, 3
    // Predicated region
    $region29: #{mlp_forward.5} parent=5 // pred_check
      %p175 = pneg %p174
    $region30: #{mlp_forward.5} parent=5 // pred_check_branch
      %177 = sbr.rel (%p175) target = $region32
    $region31: #{mlp_forward.5} parent=5 // pred_region
      // Predicated region
      $region33: #{mlp_forward.5} parent=31 // pred_check
        %p178 = pneg %p31
      $region34: #{mlp_forward.5} parent=31 // pred_check_branch
        %180 = sbr.rel (%p178) target = $region36
      $region35: #{mlp_forward.5} parent=31 // pred_region
        %s181 = smul.u32 16, %s11
        %p182 = scmp.lt.s32.totalorder %s181, 47
        %s183 = scalar_select %p182, %s181, 47
        %s184 = smul.addr %s183, 4
        %s185 = scalar_lea.vmem %s0, %s184
        %s186 = smul.u32 16, %s11
      $region36: #{mlp_forward.5} parent=31 // pred_fallthru
        _
    $region32: #{mlp_forward.5} parent=5 // pred_fallthru
      _
    %p187 = scmp.le.s32.totalorder 1, %s11
    %p188 = scmp.lt.s32.totalorder %s11, 4
    %p189 = pnand %p187, %p188
    %p190 = pneg %p189
    // Predicated region
    $region37: #{mlp_forward.5} parent=5 // pred_check
      _
    $region38: #{mlp_forward.5} parent=5 // pred_check_branch
      %192 = sbr.rel (%p189) target = $region40
    $region39: #{mlp_forward.5} parent=5 // pred_region
      %s193 = ssub.s32 %s11, 1
      %s194 = smul.u32 16, %s16
      %p195 = scmp.lt.s32.totalorder %s194, 47
      %s196 = scalar_select %p195, %s194, 47
      %s197 = smul.addr %s196, 4
      %s198 = scalar_lea.vmem %s0, %s197
      %p199 = pneg %p37
      %p200 = pneg %p34
      %p201 = pneg %p58
      %p202 = pneg %p55
      %p203 = pneg %p79
      %p204 = pneg %p76
      %p205 = pneg %p100
      %p206 = pneg %p97
      %p207 = pneg %p121
      %p208 = pneg %p118
      %p209 = pneg %p147
      %p210 = pneg %p144
      %s211 = smul.u32 16, %s16
      %p212 = scmp.lt.s32.totalorder %s211, 47
      %s213 = scalar_select %p212, %s211, 47
      %s214 = smul.addr %s213, 8
      %s215 = scalar_lea.vmem %s5, %s214
      %s216 = smul.u32 16, %s16
      %p217 = scmp.lt.s32.totalorder %s216, 47
      %s218 = scalar_select %p217, %s216, 47
      %s219 = smul.addr %s218, 4
      %s220 = scalar_lea.vmem %s0, %s219
      %s221 = smul.u32 16, %s16
      %s222 = smul.u32 16, %s16
      %p223 = scmp.lt.s32.totalorder %s222, 47
      %s224 = scalar_select %p223, %s222, 47
      %s225 = smul.addr %s224, 8
      %s226 = scalar_lea.vmem %s5, %s225
      %s227 = smul.u32 16, %s16
      %v228 = vld [vmem:[%s220] sm:$0xf]
      %v229 = vld [vmem:[%s220 + $0x4] sm:$0xf]
      %v230 = vld [vmem:[%s220 + $0x8] sm:$0xf]
      %v231 = vld [vmem:[%s220 + $0xc] sm:$0xf]
      %v232 = vld [vmem:[%s220 + $0x10] sm:$0xf]
      %v233 = vld [vmem:[%s220 + $0x14] sm:$0xf]
      %v234 = vld [vmem:[%s220 + $0x18] sm:$0xf]
      %v235 = vld [vmem:[%s220 + $0x1c] sm:$0xf]
      %v236 = vld [vmem:[%s220 + $0x20] sm:$0xf]
      %v237 = vld [vmem:[%s220 + $0x24] sm:$0xf]
      %v238 = vld [vmem:[%s220 + $0x28] sm:$0xf]
      %v239 = vld [vmem:[%s220 + $0x2c] sm:$0xf]
      %v240 = vld [vmem:[%s220 + $0x30] sm:$0xf]
      %v241 = vld [vmem:[%s220 + $0x34] sm:$0xf]
      %v242 = vld [vmem:[%s220 + $0x38] sm:$0xf]
      %v243 = vld [vmem:[%s220 + $0x3c] sm:$0xf]
      %v244 = vunpack.c.l.bf16 %v228
      %v245 = vunpack.c.l.bf16 %v229
      %v246 = vunpack.c.l.bf16 %v230
      %v247 = vunpack.c.l.bf16 %v231
      %v248 = vunpack.c.l.bf16 %v232
      %v249 = vunpack.c.l.bf16 %v233
      %v250 = vunpack.c.l.bf16 %v234
      %v251 = vunpack.c.l.bf16 %v235
      %v252 = vunpack.c.l.bf16 %v236
      %v253 = vunpack.c.l.bf16 %v237
      %v254 = vunpack.c.l.bf16 %v238
      %v255 = vunpack.c.l.bf16 %v239
      %v256 = vunpack.c.l.bf16 %v240
      %v257 = vunpack.c.l.bf16 %v241
      %v258 = vunpack.c.l.bf16 %v242
      %v259 = vunpack.c.l.bf16 %v243
      %v260 = vld [vmem:[%s1] sm:$0x1]
      %v262 = vperm.slane %v260, 0
      %v264 = vmul.f32 %v244, %v262
      %v265 = vmul.f32 %v245, %v262
      %v266 = vmul.f32 %v246, %v262
      %v267 = vmul.f32 %v247, %v262
      %v268 = vmul.f32 %v248, %v262
      %v269 = vmul.f32 %v249, %v262
      %v270 = vmul.f32 %v250, %v262
      %v271 = vmul.f32 %v251, %v262
      %v272 = vmul.f32 %v252, %v262
      %v273 = vmul.f32 %v253, %v262
      %v274 = vmul.f32 %v254, %v262
      %v275 = vmul.f32 %v255, %v262
      %v276 = vmul.f32 %v256, %v262
      %v277 = vmul.f32 %v257, %v262
      %v278 = vmul.f32 %v258, %v262
      %v279 = vmul.f32 %v259, %v262
      %v280 = vld [vmem:[%s2] sm:$0x1]
      %v282 = vperm.slane %v280, 0
      %v284 = vadd.f32 %v264, %v282
      %v285 = vadd.f32 %v265, %v282
      %v286 = vadd.f32 %v266, %v282
      %v287 = vadd.f32 %v267, %v282
      %v288 = vadd.f32 %v268, %v282
      %v289 = vadd.f32 %v269, %v282
      %v290 = vadd.f32 %v270, %v282
      %v291 = vadd.f32 %v271, %v282
      %v292 = vadd.f32 %v272, %v282
      %v293 = vadd.f32 %v273, %v282
      %v294 = vadd.f32 %v274, %v282
      %v295 = vadd.f32 %v275, %v282
      %v296 = vadd.f32 %v276, %v282
      %v297 = vadd.f32 %v277, %v282
      %v298 = vadd.f32 %v278, %v282
      %v299 = vadd.f32 %v279, %v282
      %v300 = vmax.f32 %v284, 0.0
      %v301 = vmax.f32 %v285, 0.0
      %v302 = vmax.f32 %v286, 0.0
      %v303 = vmax.f32 %v287, 0.0
      %v304 = vmax.f32 %v288, 0.0
      %v305 = vmax.f32 %v289, 0.0
      %v306 = vmax.f32 %v290, 0.0
      %v307 = vmax.f32 %v291, 0.0
      %v308 = vmax.f32 %v292, 0.0
      %v309 = vmax.f32 %v293, 0.0
      %v310 = vmax.f32 %v294, 0.0
      %v311 = vmax.f32 %v295, 0.0
      %v312 = vmax.f32 %v296, 0.0
      %v313 = vmax.f32 %v297, 0.0
      %v314 = vmax.f32 %v298, 0.0
      %v315 = vmax.f32 %v299, 0.0
      %v316 = vpack.c.bf16 %v301, %v300
      %v317 = vpack.c.bf16 %v303, %v302
      %v318 = vpack.c.bf16 %v305, %v304
      %v319 = vpack.c.bf16 %v307, %v306
      %v320 = vpack.c.bf16 %v309, %v308
      %v321 = vpack.c.bf16 %v311, %v310
      %v322 = vpack.c.bf16 %v313, %v312
      %v323 = vpack.c.bf16 %v315, %v314
      %v324 = vld [vmem:[%s3] sm:$0xf]
      %v325 = vld [vmem:[%s3 + $0x4] sm:$0xf]
      %v326 = vld [vmem:[%s3 + $0x8] sm:$0xf]
      %v327 = vld [vmem:[%s3 + $0xc] sm:$0xf]
      %v328 = vld [vmem:[%s3 + $0x10] sm:$0xf]
      %v329 = vld [vmem:[%s3 + $0x14] sm:$0xf]
      %v330 = vld [vmem:[%s3 + $0x18] sm:$0xf]
      %v331 = vld [vmem:[%s3 + $0x1c] sm:$0xf]
      %v332 = vld [vmem:[%s3 + $0x20] sm:$0xf]
      %v333 = vld [vmem:[%s3 + $0x24] sm:$0xf]
      %v334 = vld [vmem:[%s3 + $0x28] sm:$0xf]
      %v335 = vld [vmem:[%s3 + $0x2c] sm:$0xf]
      %v336 = vld [vmem:[%s3 + $0x30] sm:$0xf]
      %v337 = vld [vmem:[%s3 + $0x34] sm:$0xf]
      %v338 = vld [vmem:[%s3 + $0x38] sm:$0xf]
      %v339 = vld [vmem:[%s3 + $0x3c] sm:$0xf]
      %v340 = vld [vmem:[%s4] sm:$0x1]
      %v342 = vperm.slane %v340, 0
      %v360 = vunpack.c.l.b16 %v324
      %v361 = vunpack.c.l.b16 %v325
      %v362 = vunpack.c.l.b16 %v326
      %v363 = vunpack.c.l.b16 %v327
      %v364 = vunpack.c.l.b16 %v328
      %v365 = vunpack.c.l.b16 %v329
      %v366 = vunpack.c.l.b16 %v330
      %v367 = vunpack.c.l.b16 %v331
      %v368 = vunpack.c.l.b16 %v332
      %v369 = vunpack.c.l.b16 %v333
      %v370 = vunpack.c.l.b16 %v334
      %v371 = vunpack.c.l.b16 %v335
      %v372 = vunpack.c.l.b16 %v336
      %v373 = vunpack.c.l.b16 %v337
      %v374 = vunpack.c.l.b16 %v338
      %v375 = vunpack.c.l.b16 %v339
      %v376 = vpack.c.b16 %v361, %v360
      %v377 = vpack.c.b16 %v363, %v362
      %v378 = vpack.c.b16 %v365, %v364
      %v379 = vpack.c.b16 %v367, %v366
      %v380 = vpack.c.b16 %v369, %v368
      %v381 = vpack.c.b16 %v371, %v370
      %v382 = vpack.c.b16 %v373, %v372
      %v383 = vpack.c.b16 %v375, %v374
      %392 = vmatpush.bf16.msra.mxu0 %v383
      %393 = vmatpush.bf16.msra.mxu0 %v382
      %394 = vmatpush.bf16.msra.mxu0 %v381
      %395 = vmatpush.bf16.msra.mxu0 %v380
      %396 = vmatpush.bf16.msra.mxu0 %v379
      %397 = vmatpush.bf16.msra.mxu0 %v378
      %398 = vmatpush.bf16.msra.mxu0 %v377
      %399 = vmatpush.bf16.msra.mxu0 %v376
      %400 = vmatmul.bf16.gmra.mxu0 %v316
      %v401 = vpop.f32.mrf.mxu0
      %v402 = vadd.f32 %v342, %v401
      %v403 = vpop.f32.mrf.mxu0
      %v404 = vadd.f32 %v342, %v403
      %405 = vmatmul.bf16.gmra.mxu0 %v317
      %v406 = vpop.f32.mrf.mxu0
      %v407 = vadd.f32 %v342, %v406
      %v408 = vpop.f32.mrf.mxu0
      %v409 = vadd.f32 %v342, %v408
      %410 = vmatmul.bf16.gmra.mxu0 %v318
      %v411 = vpop.f32.mrf.mxu0
      %v412 = vadd.f32 %v342, %v411
      %v413 = vpop.f32.mrf.mxu0
      %v414 = vadd.f32 %v342, %v413
      %415 = vmatmul.bf16.gmra.mxu0 %v319
      %v416 = vpop.f32.mrf.mxu0
      %v417 = vadd.f32 %v342, %v416
      %v418 = vpop.f32.mrf.mxu0
      %v419 = vadd.f32 %v342, %v418
      %420 = vmatmul.bf16.gmra.mxu0 %v320
      %v421 = vpop.f32.mrf.mxu0
      %v422 = vadd.f32 %v342, %v421
      %v423 = vpop.f32.mrf.mxu0
      %v424 = vadd.f32 %v342, %v423
      %425 = vmatmul.bf16.gmra.mxu0 %v321
      %v426 = vpop.f32.mrf.mxu0
      %v427 = vadd.f32 %v342, %v426
      %v428 = vpop.f32.mrf.mxu0
      %v429 = vadd.f32 %v342, %v428
      %430 = vmatmul.bf16.gmra.mxu0 %v322
      %v431 = vpop.f32.mrf.mxu0
      %v432 = vadd.f32 %v342, %v431
      %v433 = vpop.f32.mrf.mxu0
      %v434 = vadd.f32 %v342, %v433
      %435 = vmatmul.bf16.gmra.mxu0 %v323
      %v436 = vpop.f32.mrf.mxu0
      %v437 = vadd.f32 %v342, %v436
      %v438 = vpop.f32.mrf.mxu0
      %v439 = vadd.f32 %v342, %v438
      %440 = vdwg.mxu0
      %441 = vst [vmem:[%s226] sm:$0xff] %v402
      %442 = vst [vmem:[%s226 + $0x8] sm:$0xff] %v404
      %443 = vst [vmem:[%s226 + $0x10] sm:$0xff] %v407
      %444 = vst [vmem:[%s226 + $0x18] sm:$0xff] %v409
      %445 = vst [vmem:[%s226 + $0x20] sm:$0xff] %v412
      %446 = vst [vmem:[%s226 + $0x28] sm:$0xff] %v414
      %447 = vst [vmem:[%s226 + $0x30] sm:$0xff] %v417
      %448 = vst [vmem:[%s226 + $0x38] sm:$0xff] %v419
      %449 = vst [vmem:[%s226 + $0x40] sm:$0xff] %v422
      %450 = vst [vmem:[%s226 + $0x48] sm:$0xff] %v424
      %451 = vst [vmem:[%s226 + $0x50] sm:$0xff] %v427
      %452 = vst [vmem:[%s226 + $0x58] sm:$0xff] %v429
      %453 = vst [vmem:[%s226 + $0x60] sm:$0xff] %v432
      %454 = vst [vmem:[%s226 + $0x68] sm:$0xff] %v434
      %455 = vst [vmem:[%s226 + $0x70] sm:$0xff] %v437
      %456 = vst [vmem:[%s226 + $0x78] sm:$0xff] %v439
      %s457 = smul.u32 16, %s16
      %p458 = scmp.lt.s32.totalorder %s457, 47
      %s459 = scalar_select %p458, %s457, 47
      %s460 = smul.addr %s459, 8
      %s461 = scalar_lea.vmem %s5, %s460
      // Predicated region
      $region41: #{mlp_forward.5} parent=39 // pred_check
        %p462 = pneg %p144
      $region42: #{mlp_forward.5} parent=39 // pred_check_branch
        %464 = sbr.rel (%p462) target = $region44
      $region43: #{mlp_forward.5} parent=39 // pred_region
        %s465 = smul.u32 16, %s16
      $region44: #{mlp_forward.5} parent=39 // pred_fallthru
        _
    $region40: #{mlp_forward.5} parent=5 // pred_fallthru
      _
    %p466 = scmp.le.s32.totalorder 2, %s11
    // Predicated region
    $region45: #{mlp_forward.5} parent=5 // pred_check
      %p467 = pneg %p466
    $region46: #{mlp_forward.5} parent=5 // pred_check_branch
      %469 = sbr.rel (%p467) target = $region48
    $region47: #{mlp_forward.5} parent=5 // pred_region
      %s470 = ssub.s32 %s11, 2
      // Predicated region
      $region49: #{mlp_forward.5} parent=47 // pred_check
        %p471 = pneg %p150
      $region50: #{mlp_forward.5} parent=47 // pred_check_branch
        %473 = sbr.rel (%p471) target = $region52
      $region51: #{mlp_forward.5} parent=47 // pred_region
        %s474 = smul.u32 16, %s17
        %p475 = scmp.lt.s32.totalorder %s474, 47
        %s476 = scalar_select %p475, %s474, 47
        %s477 = smul.addr %s476, 8
        %s478 = scalar_lea.vmem %s5, %s477
      $region52: #{mlp_forward.5} parent=47 // pred_fallthru
        _
    $region48: #{mlp_forward.5} parent=5 // pred_fallthru
      _
  $region6: #{mlp_forward.5} parent=0 // loop_footer
    %s15 = sadd.s32 1, %s11
  $region7: #{mlp_forward.5} parent=0 // loop_footer_branch
    %10 = sbr.rel target = $region3
  $region8: #{mlp_forward.5} parent=0 // loop_exit
    _

// kernel: mlp_forward.3
$region0: #{mlp_forward.3}
  #allocation0 [shape = 'u32[]', space=smem, size = 0x4, offset = 0x4, fixed_abs, tag = 'smem constant byte address 0x4 - core index']
  #allocation1 [shape = 'u32[72,128]{1,0:T(1,128)}', space=vmem, size = 0x9000, scoped, tag = 'internal scratch']
  #allocation2 [shape = 'f32[1,128]{1,0:T(1,128)}', space=vmem, size = 0x200, scoped, tag = 'scratch operand']
  #allocation3 [shape = 'f32[1,128]{1,0:T(1,128)}', space=vmem, size = 0x200, scoped, tag = 'scratch operand']
  #allocation4 [shape = 's32[1]{0}', space=sflag, size = 0x4, scoped, tag = 'scoped memory for mlp_forward.3']
  #allocation5 [shape = 's32[1]{0:T(128)S(6)}', space=smem, size = 0x200, scoped, tag = 'prefetched SMEM operand 0']
  %s0 = inlined_call_operand.<no memory space> [shape: s32[1], index: 0, kind: input, shape index: {}]
  %s1 = inlined_call_operand.vmem [shape: f32[384,128], index: 1, kind: input, shape index: {}]
  %s2 = inlined_call_operand.vmem [shape: f32[1,128], index: 2, kind: input, shape index: {}]
  %s3 = inlined_call_operand.vmem [shape: f32[1,128], index: 3, kind: input, shape index: {}]
  %s4 = inlined_call_operand.vmem [shape: bf16[128,128], index: 4, kind: input, shape index: {}]
  %s5 = inlined_call_operand.vmem [shape: f32[1,128], index: 5, kind: input, shape index: {}]
  %s6 = inlined_call_operand.vmem [shape: f32[1,128], index: 6, kind: input, shape index: {}]
  %s7 = inlined_call_operand.vmem [shape: f32[1,128], index: 7, kind: input, shape index: {}]
  %s8 = inlined_call_operand.vmem [shape: bf16[384,128], index: 8, kind: output, shape index: {0}]
  %s9 = inlined_call_operand.vmem [shape: f32[1,128], index: 9, kind: output, shape index: {1}]
  %s10 = inlined_call_operand.vmem [shape: f32[1,128], index: 10, kind: output, shape index: {2}]
  %11 = xla_tuple %s8, %s9, %s10
  %s12 = sld [smem:[#allocation0]]
  $region85: #{mlp_forward.3} parent=0
    _
  %s14 = ssub.s32 1, %s12
  %s15 = scalar_select 0, %s14, %s12
  %16 = sst [smem:[#allocation5]] %s0
  loop: start=0, step=1, limit=5
  $region2: #{mlp_forward.3} parent=0 // loop_pre_header
    _
  $region3: #{mlp_forward.3} parent=0 // loop_header
    %s18 = sphi 0, %s22
    %p19 = scmp.ge.s32.totalorder %s18, 5
    %s28 = sphi 0, %s30
    %s31 = sphi 0, %s28
    %s32 = sphi 0, %s31
    %s48 = sphi 0, %s32
    %s52 = sphi 0, %s52
    %s54 = sphi 0, %s52
    %s55 = sphi 0, %s54
    %s69 = sphi 0, %s55
    %s73 = sphi 0, %s73
    %s75 = sphi 0, %s73
    %s76 = sphi 0, %s75
    %s90 = sphi 0, %s76
    %s94 = sphi 0, %s94
    %s96 = sphi 0, %s94
    %s97 = sphi 0, %s96
    %s111 = sphi 0, %s97
    %s115 = sphi 0, %s115
    %s117 = sphi 0, %s115
    %s118 = sphi 0, %s117
    %s132 = sphi 0, %s118
    %s136 = sphi 0, %s136
    %s138 = sphi 0, %s136
    %s139 = sphi 0, %s138
    %s153 = sphi 0, %s139
    %s157 = sphi 0, %s157
    %s159 = sphi 0, %s157
    %s160 = sphi 0, %s159
    %s174 = sphi 0, %s160
    %s180 = sphi 0, %s182
    %s183 = sphi 0, %s180
    %s184 = sphi 0, %s183
    %s200 = sphi 0, %s184
    %s204 = sphi 0, %s204
    %s206 = sphi 0, %s204
    %s207 = sphi 0, %s206
    %s221 = sphi 0, %s207
    %s225 = sphi 0, %s225
    %s227 = sphi 0, %s225
    %s228 = sphi 0, %s227
    %s242 = sphi 0, %s228
  $region4: #{mlp_forward.3} parent=0 // loop_header_branch
    %21 = sbr.rel (%p19) target = $region8
  $region5: #{mlp_forward.3} parent=0 // loop_body
    %s23 = ssub.s32 %s18, 1
    %s24 = ssub.s32 %s18, 2
    %s25 = sadd.s32 %s18, 1
    %s26 = ssub.s32 %s18, %s25
    %p27 = scmp.eq.s32.totalorder %s26, 0
    %s29 = sadd.s32 %s28, 1
    %s30 = scalar_select %p27, %s28, %s29
    %p33 = pneg %p27
    %p34 = scmp.eq.s32.totalorder %s18, 2
    %p35 = por %p33, %p34
    %p36 = scmp.ne.s32.totalorder %s28, %s31
    %p37 = scmp.eq.s32.totalorder %s18, 0
    %p38 = por %p36, %p37
    %p39 = scmp.ne.s32.totalorder %s28, %s31
    %p40 = scmp.eq.s32.totalorder %s23, 2
    %p41 = por %p39, %p40
    %p42 = scmp.ne.s32.totalorder %s31, %s32
    %p43 = scmp.eq.s32.totalorder %s23, 0
    %p44 = por %p42, %p43
    %p45 = scmp.ne.s32.totalorder %s31, %s32
    %p46 = scmp.eq.s32.totalorder %s24, 2
    %p47 = por %p45, %p46
    %p49 = scmp.ne.s32.totalorder %s32, %s48
    %p50 = scmp.eq.s32.totalorder %s24, 0
    %p51 = por %p49, %p50
    %s53 = sadd.s32 %s52, 1
    %p56 = scmp.eq.s32.totalorder %s18, 2
    %p57 = scmp.ne.s32.totalorder %s52, %s54
    %p58 = scmp.eq.s32.totalorder %s18, 0
    %p59 = por %p57, %p58
    %p60 = scmp.ne.s32.totalorder %s52, %s54
    %p61 = scmp.eq.s32.totalorder %s23, 2
    %p62 = por %p60, %p61
    %p63 = scmp.ne.s32.totalorder %s54, %s55
    %p64 = scmp.eq.s32.totalorder %s23, 0
    %p65 = por %p63, %p64
    %p66 = scmp.ne.s32.totalorder %s54, %s55
    %p67 = scmp.eq.s32.totalorder %s24, 2
    %p68 = por %p66, %p67
    %p70 = scmp.ne.s32.totalorder %s55, %s69
    %p71 = scmp.eq.s32.totalorder %s24, 0
    %p72 = por %p70, %p71
    %s74 = sadd.s32 %s73, 1
    %p77 = scmp.eq.s32.totalorder %s18, 2
    %p78 = scmp.ne.s32.totalorder %s73, %s75
    %p79 = scmp.eq.s32.totalorder %s18, 0
    %p80 = por %p78, %p79
    %p81 = scmp.ne.s32.totalorder %s73, %s75
    %p82 = scmp.eq.s32.totalorder %s23, 2
    %p83 = por %p81, %p82
    %p84 = scmp.ne.s32.totalorder %s75, %s76
    %p85 = scmp.eq.s32.totalorder %s23, 0
    %p86 = por %p84, %p85
    %p87 = scmp.ne.s32.totalorder %s75, %s76
    %p88 = scmp.eq.s32.totalorder %s24, 2
    %p89 = por %p87, %p88
    %p91 = scmp.ne.s32.totalorder %s76, %s90
    %p92 = scmp.eq.s32.totalorder %s24, 0
    %p93 = por %p91, %p92
    %s95 = sadd.s32 %s94, 1
    %p98 = scmp.eq.s32.totalorder %s18, 2
    %p99 = scmp.ne.s32.totalorder %s94, %s96
    %p100 = scmp.eq.s32.totalorder %s18, 0
    %p101 = por %p99, %p100
    %p102 = scmp.ne.s32.totalorder %s94, %s96
    %p103 = scmp.eq.s32.totalorder %s23, 2
    %p104 = por %p102, %p103
    %p105 = scmp.ne.s32.totalorder %s96, %s97
    %p106 = scmp.eq.s32.totalorder %s23, 0
    %p107 = por %p105, %p106
    %p108 = scmp.ne.s32.totalorder %s96, %s97
    %p109 = scmp.eq.s32.totalorder %s24, 2
    %p110 = por %p108, %p109
    %p112 = scmp.ne.s32.totalorder %s97, %s111
    %p113 = scmp.eq.s32.totalorder %s24, 0
    %p114 = por %p112, %p113
    %s116 = sadd.s32 %s115, 1
    %p119 = scmp.eq.s32.totalorder %s18, 2
    %p120 = scmp.ne.s32.totalorder %s115, %s117
    %p121 = scmp.eq.s32.totalorder %s18, 0
    %p122 = por %p120, %p121
    %p123 = scmp.ne.s32.totalorder %s115, %s117
    %p124 = scmp.eq.s32.totalorder %s23, 2
    %p125 = por %p123, %p124
    %p126 = scmp.ne.s32.totalorder %s117, %s118
    %p127 = scmp.eq.s32.totalorder %s23, 0
    %p128 = por %p126, %p127
    %p129 = scmp.ne.s32.totalorder %s117, %s118
    %p130 = scmp.eq.s32.totalorder %s24, 2
    %p131 = por %p129, %p130
    %p133 = scmp.ne.s32.totalorder %s118, %s132
    %p134 = scmp.eq.s32.totalorder %s24, 0
    %p135 = por %p133, %p134
    %s137 = sadd.s32 %s136, 1
    %p140 = scmp.eq.s32.totalorder %s18, 2
    %p141 = scmp.ne.s32.totalorder %s136, %s138
    %p142 = scmp.eq.s32.totalorder %s18, 0
    %p143 = por %p141, %p142
    %p144 = scmp.ne.s32.totalorder %s136, %s138
    %p145 = scmp.eq.s32.totalorder %s23, 2
    %p146 = por %p144, %p145
    %p147 = scmp.ne.s32.totalorder %s138, %s139
    %p148 = scmp.eq.s32.totalorder %s23, 0
    %p149 = por %p147, %p148
    %p150 = scmp.ne.s32.totalorder %s138, %s139
    %p151 = scmp.eq.s32.totalorder %s24, 2
    %p152 = por %p150, %p151
    %p154 = scmp.ne.s32.totalorder %s139, %s153
    %p155 = scmp.eq.s32.totalorder %s24, 0
    %p156 = por %p154, %p155
    %s158 = sadd.s32 %s157, 1
    %p161 = scmp.eq.s32.totalorder %s18, 2
    %p162 = scmp.ne.s32.totalorder %s157, %s159
    %p163 = scmp.eq.s32.totalorder %s18, 0
    %p164 = por %p162, %p163
    %p165 = scmp.ne.s32.totalorder %s157, %s159
    %p166 = scmp.eq.s32.totalorder %s23, 2
    %p167 = por %p165, %p166
    %p168 = scmp.ne.s32.totalorder %s159, %s160
    %p169 = scmp.eq.s32.totalorder %s23, 0
    %p170 = por %p168, %p169
    %p171 = scmp.ne.s32.totalorder %s159, %s160
    %p172 = scmp.eq.s32.totalorder %s24, 2
    %p173 = por %p171, %p172
    %p175 = scmp.ne.s32.totalorder %s160, %s174
    %p176 = scmp.eq.s32.totalorder %s24, 0
    %p177 = por %p175, %p176
    %s178 = ssub.s32 %s18, %s25
    %p179 = scmp.eq.s32.totalorder %s178, 0
    %s181 = sadd.s32 %s180, 1
    %s182 = scalar_select %p179, %s180, %s181
    %p185 = pneg %p179
    %p186 = scmp.eq.s32.totalorder %s18, 2
    %p187 = por %p185, %p186
    %p188 = scmp.ne.s32.totalorder %s180, %s183
    %p189 = scmp.eq.s32.totalorder %s18, 0
    %p190 = por %p188, %p189
    %p191 = scmp.ne.s32.totalorder %s180, %s183
    %p192 = scmp.eq.s32.totalorder %s23, 2
    %p193 = por %p191, %p192
    %p194 = scmp.ne.s32.totalorder %s183, %s184
    %p195 = scmp.eq.s32.totalorder %s23, 0
    %p196 = por %p194, %p195
    %p197 = scmp.ne.s32.totalorder %s183, %s184
    %p198 = scmp.eq.s32.totalorder %s24, 2
    %p199 = por %p197, %p198
    %p201 = scmp.ne.s32.totalorder %s184, %s200
    %p202 = scmp.eq.s32.totalorder %s24, 0
    %p203 = por %p201, %p202
    %s205 = sadd.s32 %s204, 1
    %p208 = scmp.eq.s32.totalorder %s18, 2
    %p209 = scmp.ne.s32.totalorder %s204, %s206
    %p210 = scmp.eq.s32.totalorder %s18, 0
    %p211 = por %p209, %p210
    %p212 = scmp.ne.s32.totalorder %s204, %s206
    %p213 = scmp.eq.s32.totalorder %s23, 2
    %p214 = por %p212, %p213
    %p215 = scmp.ne.s32.totalorder %s206, %s207
    %p216 = scmp.eq.s32.totalorder %s23, 0
    %p217 = por %p215, %p216
    %p218 = scmp.ne.s32.totalorder %s206, %s207
    %p219 = scmp.eq.s32.totalorder %s24, 2
    %p220 = por %p218, %p219
    %p222 = scmp.ne.s32.totalorder %s207, %s221
    %p223 = scmp.eq.s32.totalorder %s24, 0
    %p224 = por %p222, %p223
    %s226 = sadd.s32 %s225, 1
    %p229 = scmp.eq.s32.totalorder %s18, 2
    %p230 = scmp.ne.s32.totalorder %s225, %s227
    %p231 = scmp.eq.s32.totalorder %s18, 0
    %p232 = por %p230, %p231
    %p233 = scmp.ne.s32.totalorder %s225, %s227
    %p234 = scmp.eq.s32.totalorder %s23, 2
    %p235 = por %p233, %p234
    %p236 = scmp.ne.s32.totalorder %s227, %s228
    %p237 = scmp.eq.s32.totalorder %s23, 0
    %p238 = por %p236, %p237
    %p239 = scmp.ne.s32.totalorder %s227, %s228
    %p240 = scmp.eq.s32.totalorder %s24, 2
    %p241 = por %p239, %p240
    %p243 = scmp.ne.s32.totalorder %s228, %s242
    %p244 = scmp.eq.s32.totalorder %s24, 0
    %p245 = por %p243, %p244
    %p246 = scmp.le.s32.totalorder 1, %s18
    %p247 = scmp.lt.s32.totalorder %s18, 4
    %p248 = pnand %p246, %p247
    %p249 = pneg %p248
    // Predicated region
    $region9: #{mlp_forward.3} parent=5 // pred_check
      _
    $region10: #{mlp_forward.3} parent=5 // pred_check_branch
      %251 = sbr.rel (%p248) target = $region12
    $region11: #{mlp_forward.3} parent=5 // pred_region
      %s252 = ssub.s32 %s18, 1
      // Predicated region
      $region13: #{mlp_forward.3} parent=11 // pred_check
        %p253 = pneg %p65
      $region14: #{mlp_forward.3} parent=11 // pred_check_branch
        %255 = sbr.rel (%p253) target = $region16
      $region15: #{mlp_forward.3} parent=11 // pred_region
        _
      $region16: #{mlp_forward.3} parent=11 // pred_fallthru
        _
      // Predicated region
      $region17: #{mlp_forward.3} parent=11 // pred_check
        %p256 = pneg %p86
      $region18: #{mlp_forward.3} parent=11 // pred_check_branch
        %258 = sbr.rel (%p256) target = $region20
      $region19: #{mlp_forward.3} parent=11 // pred_region
        _
      $region20: #{mlp_forward.3} parent=11 // pred_fallthru
        _
      // Predicated region
      $region21: #{mlp_forward.3} parent=11 // pred_check
        %p259 = pneg %p107
      $region22: #{mlp_forward.3} parent=11 // pred_check_branch
        %261 = sbr.rel (%p259) target = $region24
      $region23: #{mlp_forward.3} parent=11 // pred_region
        _
      $region24: #{mlp_forward.3} parent=11 // pred_fallthru
        _
      // Predicated region
      $region25: #{mlp_forward.3} parent=11 // pred_check
        %p262 = pneg %p128
      $region26: #{mlp_forward.3} parent=11 // pred_check_branch
        %264 = sbr.rel (%p262) target = $region28
      $region27: #{mlp_forward.3} parent=11 // pred_region
        _
      $region28: #{mlp_forward.3} parent=11 // pred_fallthru
        _
      // Predicated region
      $region29: #{mlp_forward.3} parent=11 // pred_check
        %p265 = pneg %p149
      $region30: #{mlp_forward.3} parent=11 // pred_check_branch
        %267 = sbr.rel (%p265) target = $region32
      $region31: #{mlp_forward.3} parent=11 // pred_region
        _
      $region32: #{mlp_forward.3} parent=11 // pred_fallthru
        _
      // Predicated region
      $region33: #{mlp_forward.3} parent=11 // pred_check
        %p268 = pneg %p170
      $region34: #{mlp_forward.3} parent=11 // pred_check_branch
        %270 = sbr.rel (%p268) target = $region36
      $region35: #{mlp_forward.3} parent=11 // pred_region
        _
      $region36: #{mlp_forward.3} parent=11 // pred_fallthru
        _
    $region12: #{mlp_forward.3} parent=5 // pred_fallthru
      _
    %p271 = scmp.lt.s32.totalorder %s18, 3
    // Predicated region
    $region37: #{mlp_forward.3} parent=5 // pred_check
      %p272 = pneg %p271
    $region38: #{mlp_forward.3} parent=5 // pred_check_branch
      %274 = sbr.rel (%p272) target = $region40
    $region39: #{mlp_forward.3} parent=5 // pred_region
      // Predicated region
      $region41: #{mlp_forward.3} parent=39 // pred_check
        %p275 = pneg %p38
      $region42: #{mlp_forward.3} parent=39 // pred_check_branch
        %277 = sbr.rel (%p275) target = $region44
      $region43: #{mlp_forward.3} parent=39 // pred_region
        %s278 = smul.u32 16, %s18
        %p279 = scmp.lt.s32.totalorder %s278, 47
        %s280 = scalar_select %p279, %s278, 47
        %s281 = smul.addr %s280, 8
        %s282 = scalar_lea.vmem %s1, %s281
        %s283 = smul.u32 16, %s18
      $region44: #{mlp_forward.3} parent=39 // pred_fallthru
        _
    $region40: #{mlp_forward.3} parent=5 // pred_fallthru
      _
    %p284 = scmp.le.s32.totalorder 1, %s18
    %p285 = scmp.lt.s32.totalorder %s18, 4
    %p286 = pnand %p284, %p285
    %p287 = pneg %p286
    // Predicated region
    $region45: #{mlp_forward.3} parent=5 // pred_check
      _
    $region46: #{mlp_forward.3} parent=5 // pred_check_branch
      %289 = sbr.rel (%p286) target = $region48
    $region47: #{mlp_forward.3} parent=5 // pred_region
      %s290 = ssub.s32 %s18, 1
      %s291 = smul.u32 16, %s23
      %p292 = scmp.lt.s32.totalorder %s291, 47
      %s293 = scalar_select %p292, %s291, 47
      %s294 = smul.addr %s293, 8
      %s295 = scalar_lea.vmem %s1, %s294
      %p296 = pneg %p44
      %p297 = pneg %p41
      %p298 = pneg %p65
      %p299 = pneg %p62
      %p300 = pneg %p86
      %p301 = pneg %p83
      %p302 = pneg %p107
      %p303 = pneg %p104
      %p304 = pneg %p128
      %p305 = pneg %p125
      %p306 = pneg %p149
      %p307 = pneg %p146
      %p308 = pneg %p170
      %p309 = pneg %p167
      %p310 = pneg %p196
      %p311 = pneg %p193
      %s312 = smul.u32 16, %s23
      %p313 = scmp.lt.s32.totalorder %s312, 47
      %s314 = scalar_select %p313, %s312, 47
      %s315 = smul.addr %s314, 4
      %s316 = scalar_lea.vmem %s8, %s315
      %p317 = pneg %p217
      %p318 = pneg %p214
      %p319 = pneg %p238
      %p320 = pneg %p235
      %s321 = smul.u32 16, %s23
      %p322 = scmp.lt.s32.totalorder %s321, 47
      %s323 = scalar_select %p322, %s321, 47
      %s324 = smul.addr %s323, 8
      %s325 = scalar_lea.vmem %s1, %s324
      %s326 = smul.u32 16, %s23
      %s327 = smul.u32 16, %s23
      %p328 = scmp.lt.s32.totalorder %s327, 47
      %s329 = scalar_select %p328, %s327, 47
      %s330 = smul.addr %s329, 4
      %s331 = scalar_lea.vmem %s8, %s330
      %s332 = smul.u32 16, %s23
      %p333 = scmp.eq.s32.totalorder %s23, 0
      // Predicated region
      $region49: #{mlp_forward.3} parent=47 // pred_check
        %p334 = pneg %p333
      $region50: #{mlp_forward.3} parent=47 // pred_check_branch
        %336 = sbr.rel (%p334) target = $region52
      $region51: #{mlp_forward.3} parent=47 // pred_region
        %337 = vst [vmem:[#allocation2] sm:$0x1] 0.0
        %338 = vst [vmem:[#allocation3] sm:$0x1] 0.0
      $region52: #{mlp_forward.3} parent=47 // pred_fallthru
        _
      %v339 = vld [vmem:[%s325] sm:$0xff]
      %v340 = vld [vmem:[%s325 + $0x8] sm:$0xff]
      %v341 = vld [vmem:[%s325 + $0x10] sm:$0xff]
      %v342 = vld [vmem:[%s325 + $0x18] sm:$0xff]
      %v343 = vld [vmem:[%s325 + $0x20] sm:$0xff]
      %v344 = vld [vmem:[%s325 + $0x28] sm:$0xff]
      %v345 = vld [vmem:[%s325 + $0x30] sm:$0xff]
      %v346 = vld [vmem:[%s325 + $0x38] sm:$0xff]
      %v347 = vld [vmem:[%s325 + $0x40] sm:$0xff]
      %v348 = vld [vmem:[%s325 + $0x48] sm:$0xff]
      %v349 = vld [vmem:[%s325 + $0x50] sm:$0xff]
      %v350 = vld [vmem:[%s325 + $0x58] sm:$0xff]
      %v351 = vld [vmem:[%s325 + $0x60] sm:$0xff]
      %v352 = vld [vmem:[%s325 + $0x68] sm:$0xff]
      %v353 = vld [vmem:[%s325 + $0x70] sm:$0xff]
      %v354 = vld [vmem:[%s325 + $0x78] sm:$0xff]
      %v355 = vpack.c.bf16 %v340, %v339
      %v356 = vpack.c.bf16 %v342, %v341
      %v357 = vpack.c.bf16 %v344, %v343
      %v358 = vpack.c.bf16 %v346, %v345
      %v359 = vpack.c.bf16 %v348, %v347
      %v360 = vpack.c.bf16 %v350, %v349
      %v361 = vpack.c.bf16 %v352, %v351
      %v362 = vpack.c.bf16 %v354, %v353
      %v363 = vld [vmem:[%s4] sm:$0xf]
      %v364 = vld [vmem:[%s4 + $0x4] sm:$0xf]
      %v365 = vld [vmem:[%s4 + $0x8] sm:$0xf]
      %v366 = vld [vmem:[%s4 + $0xc] sm:$0xf]
      %v367 = vld [vmem:[%s4 + $0x10] sm:$0xf]
      %v368 = vld [vmem:[%s4 + $0x14] sm:$0xf]
      %v369 = vld [vmem:[%s4 + $0x18] sm:$0xf]
      %v370 = vld [vmem:[%s4 + $0x1c] sm:$0xf]
      %v371 = vld [vmem:[%s4 + $0x20] sm:$0xf]
      %v372 = vld [vmem:[%s4 + $0x24] sm:$0xf]
      %v373 = vld [vmem:[%s4 + $0x28] sm:$0xf]
      %v374 = vld [vmem:[%s4 + $0x2c] sm:$0xf]
      %v375 = vld [vmem:[%s4 + $0x30] sm:$0xf]
      %v376 = vld [vmem:[%s4 + $0x34] sm:$0xf]
      %v377 = vld [vmem:[%s4 + $0x38] sm:$0xf]
      %v378 = vld [vmem:[%s4 + $0x3c] sm:$0xf]
      %v379 = vld [vmem:[%s5] sm:$0x1]
      %v381 = vperm.slane %v379, 0
      %v399 = vunpack.c.l.b16 %v363
      %v400 = vunpack.c.l.b16 %v364
      %v401 = vunpack.c.l.b16 %v365
      %v402 = vunpack.c.l.b16 %v366
      %v403 = vunpack.c.l.b16 %v367
      %v404 = vunpack.c.l.b16 %v368
      %v405 = vunpack.c.l.b16 %v369
      %v406 = vunpack.c.l.b16 %v370
      %v407 = vunpack.c.l.b16 %v371
      %v408 = vunpack.c.l.b16 %v372
      %v409 = vunpack.c.l.b16 %v373
      %v410 = vunpack.c.l.b16 %v374
      %v411 = vunpack.c.l.b16 %v375
      %v412 = vunpack.c.l.b16 %v376
      %v413 = vunpack.c.l.b16 %v377
      %v414 = vunpack.c.l.b16 %v378
      %v415 = vpack.c.b16 %v400, %v399
      %v416 = vpack.c.b16 %v402, %v401
      %v417 = vpack.c.b16 %v404, %v403
      %v418 = vpack.c.b16 %v406, %v405
      %v419 = vpack.c.b16 %v408, %v407
      %v420 = vpack.c.b16 %v410, %v409
      %v421 = vpack.c.b16 %v412, %v411
      %v422 = vpack.c.b16 %v414, %v413
      %431 = vmatpush.bf16.msra.mxu0 %v422
      %432 = vmatpush.bf16.msra.mxu0 %v421
      %433 = vmatpush.bf16.msra.mxu0 %v420
      %434 = vmatpush.bf16.msra.mxu0 %v419
      %435 = vmatpush.bf16.msra.mxu0 %v418
      %436 = vmatpush.bf16.msra.mxu0 %v417
      %437 = vmatpush.bf16.msra.mxu0 %v416
      %438 = vmatpush.bf16.msra.mxu0 %v415
      %439 = vmatmul.bf16.gmra.mxu0 %v355
      %v440 = vpop.f32.mrf.mxu0
      %v441 = vadd.f32 %v381, %v440
      %v442 = vpop.f32.mrf.mxu0
      %v443 = vadd.f32 %v381, %v442
      %444 = vmatmul.bf16.gmra.mxu0 %v356
      %v445 = vpop.f32.mrf.mxu0
      %v446 = vadd.f32 %v381, %v445
      %v447 = vpop.f32.mrf.mxu0
      %v448 = vadd.f32 %v381, %v447
      %449 = vmatmul.bf16.gmra.mxu0 %v357
      %v450 = vpop.f32.mrf.mxu0
      %v451 = vadd.f32 %v381, %v450
      %v452 = vpop.f32.mrf.mxu0
      %v453 = vadd.f32 %v381, %v452
      %454 = vmatmul.bf16.gmra.mxu0 %v358
      %v455 = vpop.f32.mrf.mxu0
      %v456 = vadd.f32 %v381, %v455
      %v457 = vpop.f32.mrf.mxu0
      %v458 = vadd.f32 %v381, %v457
      %459 = vmatmul.bf16.gmra.mxu0 %v359
      %v460 = vpop.f32.mrf.mxu0
      %v461 = vadd.f32 %v381, %v460
      %v462 = vpop.f32.mrf.mxu0
      %v463 = vadd.f32 %v381, %v462
      %464 = vmatmul.bf16.gmra.mxu0 %v360
      %v465 = vpop.f32.mrf.mxu0
      %v466 = vadd.f32 %v381, %v465
      %v467 = vpop.f32.mrf.mxu0
      %v468 = vadd.f32 %v381, %v467
      %469 = vmatmul.bf16.gmra.mxu0 %v361
      %v470 = vpop.f32.mrf.mxu0
      %v471 = vadd.f32 %v381, %v470
      %v472 = vpop.f32.mrf.mxu0
      %v473 = vadd.f32 %v381, %v472
      %474 = vmatmul.bf16.gmra.mxu0 %v362
      %v475 = vpop.f32.mrf.mxu0
      %v476 = vadd.f32 %v381, %v475
      %v477 = vpop.f32.mrf.mxu0
      %v478 = vadd.f32 %v381, %v477
      %479 = vdwg.mxu0
      %v480 = vpack.c.bf16 %v441, %v441
      %v481 = vpack.c.bf16 %v443, %v443
      %v482 = vpack.c.bf16 %v446, %v446
      %v483 = vpack.c.bf16 %v448, %v448
      %v484 = vpack.c.bf16 %v451, %v451
      %v485 = vpack.c.bf16 %v453, %v453
      %v486 = vpack.c.bf16 %v456, %v456
      %v487 = vpack.c.bf16 %v458, %v458
      %v488 = vpack.c.bf16 %v461, %v461
      %v489 = vpack.c.bf16 %v463, %v463
      %v490 = vpack.c.bf16 %v466, %v466
      %v491 = vpack.c.bf16 %v468, %v468
      %v492 = vpack.c.bf16 %v471, %v471
      %v493 = vpack.c.bf16 %v473, %v473
      %v494 = vpack.c.bf16 %v476, %v476
      %v495 = vpack.c.bf16 %v478, %v478
      %496 = vst [vmem:[%s331] sm:$0xf] %v480
      %497 = vst [vmem:[%s331 + $0x4] sm:$0xf] %v481
      %498 = vst [vmem:[%s331 + $0x8] sm:$0xf] %v482
      %499 = vst [vmem:[%s331 + $0xc] sm:$0xf] %v483
      %500 = vst [vmem:[%s331 + $0x10] sm:$0xf] %v484
      %501 = vst [vmem:[%s331 + $0x14] sm:$0xf] %v485
      %502 = vst [vmem:[%s331 + $0x18] sm:$0xf] %v486
      %503 = vst [vmem:[%s331 + $0x1c] sm:$0xf] %v487
      %504 = vst [vmem:[%s331 + $0x20] sm:$0xf] %v488
      %505 = vst [vmem:[%s331 + $0x24] sm:$0xf] %v489
      %506 = vst [vmem:[%s331 + $0x28] sm:$0xf] %v490
      %507 = vst [vmem:[%s331 + $0x2c] sm:$0xf] %v491
      %508 = vst [vmem:[%s331 + $0x30] sm:$0xf] %v492
      %509 = vst [vmem:[%s331 + $0x34] sm:$0xf] %v493
      %510 = vst [vmem:[%s331 + $0x38] sm:$0xf] %v494
      %511 = vst [vmem:[%s331 + $0x3c] sm:$0xf] %v495
      %s512 = smul.u32 %s23, 128
      %v513 = vlaneseq
      %v514 = vshrl.u32 %v513, 7
      %v515 = vadd.s32 %v514, 8
      %v516 = vadd.s32 %v514, 16
      %v517 = vadd.s32 %v514, 24
      %v518 = vadd.s32 %v514, 32
      %v519 = vadd.s32 %v514, 40
      %v520 = vadd.s32 %v514, 48
      %v521 = vadd.s32 %v514, 56
      %v522 = vadd.s32 %v514, 64
      %v523 = vadd.s32 %v514, 72
      %v524 = vadd.s32 %v514, 80
      %v525 = vadd.s32 %v514, 88
      %v526 = vadd.s32 %v514, 96
      %v527 = vadd.s32 %v514, 104
      %v528 = vadd.s32 %v514, 112
      %v529 = vadd.s32 %v514, 120
      %v530 = vstv %s512
      %v531 = vadd.s32 %v530, %v514
      %v532 = vadd.s32 %v530, %v515
      %v533 = vadd.s32 %v530, %v516
      %v534 = vadd.s32 %v530, %v517
      %v535 = vadd.s32 %v530, %v518
      %v536 = vadd.s32 %v530, %v519
      %v537 = vadd.s32 %v530, %v520
      %v538 = vadd.s32 %v530, %v521
      %v539 = vadd.s32 %v530, %v522
      %v540 = vadd.s32 %v530, %v523
      %v541 = vadd.s32 %v530, %v524
      %v542 = vadd.s32 %v530, %v525
      %v543 = vadd.s32 %v530, %v526
      %v544 = vadd.s32 %v530, %v527
      %v545 = vadd.s32 %v530, %v528
      %v546 = vadd.s32 %v530, %v529
      %s547 = sld [smem:[#allocation5]]
      %v548 = vstv %s547
      %vm549 = vcmp.lt.s32.totalorder %v531, %v548
      %vm550 = vcmp.lt.s32.totalorder %v532, %v548
      %vm551 = vcmp.lt.s32.totalorder %v533, %v548
      %vm552 = vcmp.lt.s32.totalorder %v534, %v548
      %vm553 = vcmp.lt.s32.totalorder %v535, %v548
      %vm554 = vcmp.lt.s32.totalorder %v536, %v548
      %vm555 = vcmp.lt.s32.totalorder %v537, %v548
      %vm556 = vcmp.lt.s32.totalorder %v538, %v548
      %vm557 = vcmp.lt.s32.totalorder %v539, %v548
      %vm558 = vcmp.lt.s32.totalorder %v540, %v548
      %vm559 = vcmp.lt.s32.totalorder %v541, %v548
      %vm560 = vcmp.lt.s32.totalorder %v542, %v548
      %vm561 = vcmp.lt.s32.totalorder %v543, %v548
      %vm562 = vcmp.lt.s32.totalorder %v544, %v548
      %vm563 = vcmp.lt.s32.totalorder %v545, %v548
      %vm564 = vcmp.lt.s32.totalorder %v546, %v548
      %v565 = vsel %vm549, 1, 0
      %v566 = vsel %vm550, 1, 0
      %v567 = vsel %vm551, 1, 0
      %v568 = vsel %vm552, 1, 0
      %v569 = vsel %vm553, 1, 0
      %v570 = vsel %vm554, 1, 0
      %v571 = vsel %vm555, 1, 0
      %v572 = vsel %vm556, 1, 0
      %v573 = vsel %vm557, 1, 0
      %v574 = vsel %vm558, 1, 0
      %v575 = vsel %vm559, 1, 0
      %v576 = vsel %vm560, 1, 0
      %v577 = vsel %vm561, 1, 0
      %v578 = vsel %vm562, 1, 0
      %v579 = vsel %vm563, 1, 0
      %v580 = vsel %vm564, 1, 0
      %vm581 = vcmp.eq.s32.totalorder %v565, 1
      %vm582 = vcmp.eq.s32.totalorder %v566, 1
      %vm583 = vcmp.eq.s32.totalorder %v567, 1
      %vm584 = vcmp.eq.s32.totalorder %v568, 1
      %vm585 = vcmp.eq.s32.totalorder %v569, 1
      %vm586 = vcmp.eq.s32.totalorder %v570, 1
      %vm587 = vcmp.eq.s32.totalorder %v571, 1
      %vm588 = vcmp.eq.s32.totalorder %v572, 1
      %vm589 = vcmp.eq.s32.totalorder %v573, 1
      %vm590 = vcmp.eq.s32.totalorder %v574, 1
      %vm591 = vcmp.eq.s32.totalorder %v575, 1
      %vm592 = vcmp.eq.s32.totalorder %v576, 1
      %vm593 = vcmp.eq.s32.totalorder %v577, 1
      %vm594 = vcmp.eq.s32.totalorder %v578, 1
      %vm595 = vcmp.eq.s32.totalorder %v579, 1
      %vm596 = vcmp.eq.s32.totalorder %v580, 1
      %v597 = vsel %vm581, %v441, 0.0
      %v598 = vsel %vm582, %v443, 0.0
      %v599 = vsel %vm583, %v446, 0.0
      %v600 = vsel %vm584, %v448, 0.0
      %v601 = vsel %vm585, %v451, 0.0
      %v602 = vsel %vm586, %v453, 0.0
      %v603 = vsel %vm587, %v456, 0.0
      %v604 = vsel %vm588, %v458, 0.0
      %v605 = vsel %vm589, %v461, 0.0
      %v606 = vsel %vm590, %v463, 0.0
      %v607 = vsel %vm591, %v466, 0.0
      %v608 = vsel %vm592, %v468, 0.0
      %v609 = vsel %vm593, %v471, 0.0
      %v610 = vsel %vm594, %v473, 0.0
      %v611 = vsel %vm595, %v476, 0.0
      %v612 = vsel %vm596, %v478, 0.0
      %v613 = vld [vmem:[#allocation2] sm:$0x1]
      %v614 = vadd.f32 %v597, %v598
      %v615 = vadd.f32 %v614, %v599
      %v616 = vadd.f32 %v615, %v600
      %v617 = vadd.f32 %v616, %v601
      %v618 = vadd.f32 %v617, %v602
      %v619 = vadd.f32 %v618, %v603
      %v620 = vadd.f32 %v619, %v604
      %v621 = vadd.f32 %v620, %v605
      %v622 = vadd.f32 %v621, %v606
      %v623 = vadd.f32 %v622, %v607
      %v624 = vadd.f32 %v623, %v608
      %v625 = vadd.f32 %v624, %v609
      %v626 = vadd.f32 %v625, %v610
      %v627 = vadd.f32 %v626, %v611
      %v628 = vadd.f32 %v627, %v612
      %v629 = vrot.slane %v628, 4
      %v630 = vadd.f32 %v628, %v629
      %v631 = vrot.slane %v630, 2
      %v632 = vadd.f32 %v630, %v631
      %v633 = vrot.slane %v632, 1
      %v634 = vadd.f32 %v632, %v633
      %v635 = vadd.f32 %v613, %v634
      %636 = vst [vmem:[#allocation2] sm:$0x1] %v635
      %v637 = vld [vmem:[#allocation3] sm:$0x1]
      %v638 = vmul.f32 %v597, %v597
      %v639 = vmul.f32 %v598, %v598
      %v640 = vmul.f32 %v599, %v599
      %v641 = vmul.f32 %v600, %v600
      %v642 = vmul.f32 %v601, %v601
      %v643 = vmul.f32 %v602, %v602
      %v644 = vmul.f32 %v603, %v603
      %v645 = vmul.f32 %v604, %v604
      %v646 = vmul.f32 %v605, %v605
      %v647 = vmul.f32 %v606, %v606
      %v648 = vmul.f32 %v607, %v607
      %v649 = vmul.f32 %v608, %v608
      %v650 = vmul.f32 %v609, %v609
      %v651 = vmul.f32 %v610, %v610
      %v652 = vmul.f32 %v611, %v611
      %v653 = vmul.f32 %v612, %v612
      %v654 = vadd.f32 %v638, %v639
      %v655 = vadd.f32 %v654, %v640
      %v656 = vadd.f32 %v655, %v641
      %v657 = vadd.f32 %v656, %v642
      %v658 = vadd.f32 %v657, %v643
      %v659 = vadd.f32 %v658, %v644
      %v660 = vadd.f32 %v659, %v645
      %v661 = vadd.f32 %v660, %v646
      %v662 = vadd.f32 %v661, %v647
      %v663 = vadd.f32 %v662, %v648
      %v664 = vadd.f32 %v663, %v649
      %v665 = vadd.f32 %v664, %v650
      %v666 = vadd.f32 %v665, %v651
      %v667 = vadd.f32 %v666, %v652
      %v668 = vadd.f32 %v667, %v653
      %v669 = vrot.slane %v668, 4
      %v670 = vadd.f32 %v668, %v669
      %v671 = vrot.slane %v670, 2
      %v672 = vadd.f32 %v670, %v671
      %v673 = vrot.slane %v672, 1
      %v674 = vadd.f32 %v672, %v673
      %v675 = vadd.f32 %v637, %v674
      %676 = vst [vmem:[#allocation3] sm:$0x1] %v675
      %p677 = scmp.eq.s32.totalorder %s23, 2
      // Predicated region
      $region53: #{mlp_forward.3} parent=47 // pred_check
        %p678 = pneg %p677
      $region54: #{mlp_forward.3} parent=47 // pred_check_branch
        %680 = sbr.rel (%p678) target = $region56
      $region55: #{mlp_forward.3} parent=47 // pred_region
        %s681 = sld [smem:[#allocation5]]
        %s682 = scvt.s32.f32 %s681
        %v683 = vstv %s682
        %v684 = vrcp.pop %v683
        %v685 = vmul.f32 %v683, %v684
        %v686 = vsub.f32 1.0, %v685
        %v687 = vmul.f32 %v684, %v686
        %v688 = vadd.f32 %v684, %v687
        %vm689 = vweird.f32 %v683
        %vm690 = vweird.f32 %v684
        %vm691 = vmor %vm689, %vm690
        %v692 = vsel %vm691, %v684, %v688
        %v693 = vand.u32 2147483647, %v683
        %vm694 = vcmp.eq.f32.partialorder %v693, 8.507059e+37
        %v695 = vand.u32 %v683, 2147483648
        %v696 = vor.u32 1.1754944e-38, %v695
        %v697 = vsel %vm694, %v696, %v692
        %s698 = vtos %v697
        %v699 = vld [vmem:[#allocation2] sm:$0x1]
        %v700 = vstv %s698
        %v701 = vmul.f32 %v699, %v700
        %v702 = vld [vmem:[#allocation3] sm:$0x1]
        %v703 = vmul.f32 %v702, %v700
        %v704 = vmul.f32 %v701, %v701
        %v705 = vsub.f32 %v703, %v704
        %v706 = vmax.f32 %v705, 0.0
        %v707 = vld [vmem:[%s6] sm:$0x1]
        %v708 = vadd.f32 %v706, 1e-05
        %v709 = vrsqrt.pop %v708
        %v710 = vmul.f32 %v709, %v708
        %v711 = vmul.f32 %v710, %v709
        %v712 = vmul.f32 0.5, %v711
        %v713 = vsub.f32 1.5, %v712
        %v714 = vmul.f32 %v709, %v713
        %vm715 = vweird.f32 %v708
        %vm716 = vweird.f32 %v709
        %vm717 = vmor %vm715, %vm716
        %v718 = vsel %vm717, %v709, %v714
        %v719 = vmul.f32 %v707, %v718
        %720 = vst [vmem:[%s9] sm:$0x1] %v719
        %v721 = vld [vmem:[%s7] sm:$0x1]
        %v722 = vmul.f32 %v701, %v719
        %v723 = vsub.f32 %v721, %v722
        %724 = vst [vmem:[%s10] sm:$0x1] %v723
      $region56: #{mlp_forward.3} parent=47 // pred_fallthru
        _
      %s725 = smul.u32 16, %s23
      %p726 = scmp.lt.s32.totalorder %s725, 47
      %s727 = scalar_select %p726, %s725, 47
      %s728 = smul.addr %s727, 4
      %s729 = scalar_lea.vmem %s8, %s728
      // Predicated region
      $region57: #{mlp_forward.3} parent=47 // pred_check
        %p730 = pneg %p193
      $region58: #{mlp_forward.3} parent=47 // pred_check_branch
        %732 = sbr.rel (%p730) target = $region60
      $region59: #{mlp_forward.3} parent=47 // pred_region
        %s733 = smul.u32 16, %s23
      $region60: #{mlp_forward.3} parent=47 // pred_fallthru
        _
      // Predicated region
      $region61: #{mlp_forward.3} parent=47 // pred_check
        %p734 = pneg %p214
      $region62: #{mlp_forward.3} parent=47 // pred_check_branch
        %736 = sbr.rel (%p734) target = $region64
      $region63: #{mlp_forward.3} parent=47 // pred_region
        _
      $region64: #{mlp_forward.3} parent=47 // pred_fallthru
        _
      // Predicated region
      $region65: #{mlp_forward.3} parent=47 // pred_check
        %p737 = pneg %p235
      $region66: #{mlp_forward.3} parent=47 // pred_check_branch
        %739 = sbr.rel (%p737) target = $region68
      $region67: #{mlp_forward.3} parent=47 // pred_region
        _
      $region68: #{mlp_forward.3} parent=47 // pred_fallthru
        _
      // Predicated region
      $region69: #{mlp_forward.3} parent=47 // pred_check
        %p740 = pneg %p214
      $region70: #{mlp_forward.3} parent=47 // pred_check_branch
        %742 = sbr.rel (%p740) target = $region72
      $region71: #{mlp_forward.3} parent=47 // pred_region
        _
      $region72: #{mlp_forward.3} parent=47 // pred_fallthru
        _
      // Predicated region
      $region73: #{mlp_forward.3} parent=47 // pred_check
        %p743 = pneg %p235
      $region74: #{mlp_forward.3} parent=47 // pred_check_branch
        %745 = sbr.rel (%p743) target = $region76
      $region75: #{mlp_forward.3} parent=47 // pred_region
        _
      $region76: #{mlp_forward.3} parent=47 // pred_fallthru
        _
    $region48: #{mlp_forward.3} parent=5 // pred_fallthru
      _
    %p746 = scmp.le.s32.totalorder 2, %s18
    // Predicated region
    $region77: #{mlp_forward.3} parent=5 // pred_check
      %p747 = pneg %p746
    $region78: #{mlp_forward.3} parent=5 // pred_check_branch
      %749 = sbr.rel (%p747) target = $region80
    $region79: #{mlp_forward.3} parent=5 // pred_region
      %s750 = ssub.s32 %s18, 2
      // Predicated region
      $region81: #{mlp_forward.3} parent=79 // pred_check
        %p751 = pneg %p199
      $region82: #{mlp_forward.3} parent=79 // pred_check_branch
        %753 = sbr.rel (%p751) target = $region84
      $region83: #{mlp_forward.3} parent=79 // pred_region
        %s754 = smul.u32 16, %s24
        %p755 = scmp.lt.s32.totalorder %s754, 47
        %s756 = scalar_select %p755, %s754, 47
        %s757 = smul.addr %s756, 4
        %s758 = scalar_lea.vmem %s8, %s757
      $region84: #{mlp_forward.3} parent=79 // pred_fallthru
        _
    $region80: #{mlp_forward.3} parent=5 // pred_fallthru
      _
  $region6: #{mlp_forward.3} parent=0 // loop_footer
    %s22 = sadd.s32 1, %s18
  $region7: #{mlp_forward.3} parent=0 // loop_footer_branch
    %17 = sbr.rel target = $region3
  $region8: #{mlp_forward.3} parent=0 // loop_exit
    _

// kernel: mlp_forward.4
$region0: #{mlp_forward.4}
  #allocation0 [shape = 'u32[]', space=smem, size = 0x4, offset = 0x4, fixed_abs, tag = 'smem constant byte address 0x4 - core index']
  #allocation1 [shape = 'u32[72,128]{1,0:T(1,128)}', space=vmem, size = 0x9000, scoped, tag = 'internal scratch']
  #allocation2 [shape = 'f32[1,128]{1,0:T(1,128)}', space=vmem, size = 0x200, scoped, tag = 'scratch operand']
  #allocation3 [shape = 'f32[1,128]{1,0:T(1,128)}', space=vmem, size = 0x200, scoped, tag = 'scratch operand']
  #allocation4 [shape = 's32[1]{0}', space=sflag, size = 0x4, scoped, tag = 'scoped memory for mlp_forward.4']
  #allocation5 [shape = 's32[1]{0:T(128)S(6)}', space=smem, size = 0x200, scoped, tag = 'prefetched SMEM operand 0']
  %s0 = inlined_call_operand.<no memory space> [shape: s32[1], index: 0, kind: input, shape index: {}]
  %s1 = inlined_call_operand.vmem [shape: bf16[384,128], index: 1, kind: input, shape index: {}]
  %s2 = inlined_call_operand.vmem [shape: f32[1,128], index: 2, kind: input, shape index: {}]
  %s3 = inlined_call_operand.vmem [shape: f32[1,128], index: 3, kind: input, shape index: {}]
  %s4 = inlined_call_operand.vmem [shape: bf16[128,128], index: 4, kind: input, shape index: {}]
  %s5 = inlined_call_operand.vmem [shape: f32[1,128], index: 5, kind: input, shape index: {}]
  %s6 = inlined_call_operand.vmem [shape: f32[1,128], index: 6, kind: input, shape index: {}]
  %s7 = inlined_call_operand.vmem [shape: f32[1,128], index: 7, kind: input, shape index: {}]
  %s8 = inlined_call_operand.vmem [shape: bf16[384,128], index: 8, kind: output, shape index: {0}]
  %s9 = inlined_call_operand.vmem [shape: f32[1,128], index: 9, kind: output, shape index: {1}]
  %s10 = inlined_call_operand.vmem [shape: f32[1,128], index: 10, kind: output, shape index: {2}]
  %11 = xla_tuple %s8, %s9, %s10
  %s12 = sld [smem:[#allocation0]]
  $region85: #{mlp_forward.4} parent=0
    _
  %s14 = ssub.s32 1, %s12
  %s15 = scalar_select 0, %s14, %s12
  %16 = sst [smem:[#allocation5]] %s0
  loop: start=0, step=1, limit=5
  $region2: #{mlp_forward.4} parent=0 // loop_pre_header
    _
  $region3: #{mlp_forward.4} parent=0 // loop_header
    %s18 = sphi 0, %s22
    %p19 = scmp.ge.s32.totalorder %s18, 5
    %s28 = sphi 0, %s30
    %s31 = sphi 0, %s28
    %s32 = sphi 0, %s31
    %s48 = sphi 0, %s32
    %s52 = sphi 0, %s52
    %s54 = sphi 0, %s52
    %s55 = sphi 0, %s54
    %s69 = sphi 0, %s55
    %s73 = sphi 0, %s73
    %s75 = sphi 0, %s73
    %s76 = sphi 0, %s75
    %s90 = sphi 0, %s76
    %s94 = sphi 0, %s94
    %s96 = sphi 0, %s94
    %s97 = sphi 0, %s96
    %s111 = sphi 0, %s97
    %s115 = sphi 0, %s115
    %s117 = sphi 0, %s115
    %s118 = sphi 0, %s117
    %s132 = sphi 0, %s118
    %s136 = sphi 0, %s136
    %s138 = sphi 0, %s136
    %s139 = sphi 0, %s138
    %s153 = sphi 0, %s139
    %s157 = sphi 0, %s157
    %s159 = sphi 0, %s157
    %s160 = sphi 0, %s159
    %s174 = sphi 0, %s160
    %s180 = sphi 0, %s182
    %s183 = sphi 0, %s180
    %s184 = sphi 0, %s183
    %s200 = sphi 0, %s184
    %s204 = sphi 0, %s204
    %s206 = sphi 0, %s204
    %s207 = sphi 0, %s206
    %s221 = sphi 0, %s207
    %s225 = sphi 0, %s225
    %s227 = sphi 0, %s225
    %s228 = sphi 0, %s227
    %s242 = sphi 0, %s228
  $region4: #{mlp_forward.4} parent=0 // loop_header_branch
    %21 = sbr.rel (%p19) target = $region8
  $region5: #{mlp_forward.4} parent=0 // loop_body
    %s23 = ssub.s32 %s18, 1
    %s24 = ssub.s32 %s18, 2
    %s25 = sadd.s32 %s18, 1
    %s26 = ssub.s32 %s18, %s25
    %p27 = scmp.eq.s32.totalorder %s26, 0
    %s29 = sadd.s32 %s28, 1
    %s30 = scalar_select %p27, %s28, %s29
    %p33 = pneg %p27
    %p34 = scmp.eq.s32.totalorder %s18, 2
    %p35 = por %p33, %p34
    %p36 = scmp.ne.s32.totalorder %s28, %s31
    %p37 = scmp.eq.s32.totalorder %s18, 0
    %p38 = por %p36, %p37
    %p39 = scmp.ne.s32.totalorder %s28, %s31
    %p40 = scmp.eq.s32.totalorder %s23, 2
    %p41 = por %p39, %p40
    %p42 = scmp.ne.s32.totalorder %s31, %s32
    %p43 = scmp.eq.s32.totalorder %s23, 0
    %p44 = por %p42, %p43
    %p45 = scmp.ne.s32.totalorder %s31, %s32
    %p46 = scmp.eq.s32.totalorder %s24, 2
    %p47 = por %p45, %p46
    %p49 = scmp.ne.s32.totalorder %s32, %s48
    %p50 = scmp.eq.s32.totalorder %s24, 0
    %p51 = por %p49, %p50
    %s53 = sadd.s32 %s52, 1
    %p56 = scmp.eq.s32.totalorder %s18, 2
    %p57 = scmp.ne.s32.totalorder %s52, %s54
    %p58 = scmp.eq.s32.totalorder %s18, 0
    %p59 = por %p57, %p58
    %p60 = scmp.ne.s32.totalorder %s52, %s54
    %p61 = scmp.eq.s32.totalorder %s23, 2
    %p62 = por %p60, %p61
    %p63 = scmp.ne.s32.totalorder %s54, %s55
    %p64 = scmp.eq.s32.totalorder %s23, 0
    %p65 = por %p63, %p64
    %p66 = scmp.ne.s32.totalorder %s54, %s55
    %p67 = scmp.eq.s32.totalorder %s24, 2
    %p68 = por %p66, %p67
    %p70 = scmp.ne.s32.totalorder %s55, %s69
    %p71 = scmp.eq.s32.totalorder %s24, 0
    %p72 = por %p70, %p71
    %s74 = sadd.s32 %s73, 1
    %p77 = scmp.eq.s32.totalorder %s18, 2
    %p78 = scmp.ne.s32.totalorder %s73, %s75
    %p79 = scmp.eq.s32.totalorder %s18, 0
    %p80 = por %p78, %p79
    %p81 = scmp.ne.s32.totalorder %s73, %s75
    %p82 = scmp.eq.s32.totalorder %s23, 2
    %p83 = por %p81, %p82
    %p84 = scmp.ne.s32.totalorder %s75, %s76
    %p85 = scmp.eq.s32.totalorder %s23, 0
    %p86 = por %p84, %p85
    %p87 = scmp.ne.s32.totalorder %s75, %s76
    %p88 = scmp.eq.s32.totalorder %s24, 2
    %p89 = por %p87, %p88
    %p91 = scmp.ne.s32.totalorder %s76, %s90
    %p92 = scmp.eq.s32.totalorder %s24, 0
    %p93 = por %p91, %p92
    %s95 = sadd.s32 %s94, 1
    %p98 = scmp.eq.s32.totalorder %s18, 2
    %p99 = scmp.ne.s32.totalorder %s94, %s96
    %p100 = scmp.eq.s32.totalorder %s18, 0
    %p101 = por %p99, %p100
    %p102 = scmp.ne.s32.totalorder %s94, %s96
    %p103 = scmp.eq.s32.totalorder %s23, 2
    %p104 = por %p102, %p103
    %p105 = scmp.ne.s32.totalorder %s96, %s97
    %p106 = scmp.eq.s32.totalorder %s23, 0
    %p107 = por %p105, %p106
    %p108 = scmp.ne.s32.totalorder %s96, %s97
    %p109 = scmp.eq.s32.totalorder %s24, 2
    %p110 = por %p108, %p109
    %p112 = scmp.ne.s32.totalorder %s97, %s111
    %p113 = scmp.eq.s32.totalorder %s24, 0
    %p114 = por %p112, %p113
    %s116 = sadd.s32 %s115, 1
    %p119 = scmp.eq.s32.totalorder %s18, 2
    %p120 = scmp.ne.s32.totalorder %s115, %s117
    %p121 = scmp.eq.s32.totalorder %s18, 0
    %p122 = por %p120, %p121
    %p123 = scmp.ne.s32.totalorder %s115, %s117
    %p124 = scmp.eq.s32.totalorder %s23, 2
    %p125 = por %p123, %p124
    %p126 = scmp.ne.s32.totalorder %s117, %s118
    %p127 = scmp.eq.s32.totalorder %s23, 0
    %p128 = por %p126, %p127
    %p129 = scmp.ne.s32.totalorder %s117, %s118
    %p130 = scmp.eq.s32.totalorder %s24, 2
    %p131 = por %p129, %p130
    %p133 = scmp.ne.s32.totalorder %s118, %s132
    %p134 = scmp.eq.s32.totalorder %s24, 0
    %p135 = por %p133, %p134
    %s137 = sadd.s32 %s136, 1
    %p140 = scmp.eq.s32.totalorder %s18, 2
    %p141 = scmp.ne.s32.totalorder %s136, %s138
    %p142 = scmp.eq.s32.totalorder %s18, 0
    %p143 = por %p141, %p142
    %p144 = scmp.ne.s32.totalorder %s136, %s138
    %p145 = scmp.eq.s32.totalorder %s23, 2
    %p146 = por %p144, %p145
    %p147 = scmp.ne.s32.totalorder %s138, %s139
    %p148 = scmp.eq.s32.totalorder %s23, 0
    %p149 = por %p147, %p148
    %p150 = scmp.ne.s32.totalorder %s138, %s139
    %p151 = scmp.eq.s32.totalorder %s24, 2
    %p152 = por %p150, %p151
    %p154 = scmp.ne.s32.totalorder %s139, %s153
    %p155 = scmp.eq.s32.totalorder %s24, 0
    %p156 = por %p154, %p155
    %s158 = sadd.s32 %s157, 1
    %p161 = scmp.eq.s32.totalorder %s18, 2
    %p162 = scmp.ne.s32.totalorder %s157, %s159
    %p163 = scmp.eq.s32.totalorder %s18, 0
    %p164 = por %p162, %p163
    %p165 = scmp.ne.s32.totalorder %s157, %s159
    %p166 = scmp.eq.s32.totalorder %s23, 2
    %p167 = por %p165, %p166
    %p168 = scmp.ne.s32.totalorder %s159, %s160
    %p169 = scmp.eq.s32.totalorder %s23, 0
    %p170 = por %p168, %p169
    %p171 = scmp.ne.s32.totalorder %s159, %s160
    %p172 = scmp.eq.s32.totalorder %s24, 2
    %p173 = por %p171, %p172
    %p175 = scmp.ne.s32.totalorder %s160, %s174
    %p176 = scmp.eq.s32.totalorder %s24, 0
    %p177 = por %p175, %p176
    %s178 = ssub.s32 %s18, %s25
    %p179 = scmp.eq.s32.totalorder %s178, 0
    %s181 = sadd.s32 %s180, 1
    %s182 = scalar_select %p179, %s180, %s181
    %p185 = pneg %p179
    %p186 = scmp.eq.s32.totalorder %s18, 2
    %p187 = por %p185, %p186
    %p188 = scmp.ne.s32.totalorder %s180, %s183
    %p189 = scmp.eq.s32.totalorder %s18, 0
    %p190 = por %p188, %p189
    %p191 = scmp.ne.s32.totalorder %s180, %s183
    %p192 = scmp.eq.s32.totalorder %s23, 2
    %p193 = por %p191, %p192
    %p194 = scmp.ne.s32.totalorder %s183, %s184
    %p195 = scmp.eq.s32.totalorder %s23, 0
    %p196 = por %p194, %p195
    %p197 = scmp.ne.s32.totalorder %s183, %s184
    %p198 = scmp.eq.s32.totalorder %s24, 2
    %p199 = por %p197, %p198
    %p201 = scmp.ne.s32.totalorder %s184, %s200
    %p202 = scmp.eq.s32.totalorder %s24, 0
    %p203 = por %p201, %p202
    %s205 = sadd.s32 %s204, 1
    %p208 = scmp.eq.s32.totalorder %s18, 2
    %p209 = scmp.ne.s32.totalorder %s204, %s206
    %p210 = scmp.eq.s32.totalorder %s18, 0
    %p211 = por %p209, %p210
    %p212 = scmp.ne.s32.totalorder %s204, %s206
    %p213 = scmp.eq.s32.totalorder %s23, 2
    %p214 = por %p212, %p213
    %p215 = scmp.ne.s32.totalorder %s206, %s207
    %p216 = scmp.eq.s32.totalorder %s23, 0
    %p217 = por %p215, %p216
    %p218 = scmp.ne.s32.totalorder %s206, %s207
    %p219 = scmp.eq.s32.totalorder %s24, 2
    %p220 = por %p218, %p219
    %p222 = scmp.ne.s32.totalorder %s207, %s221
    %p223 = scmp.eq.s32.totalorder %s24, 0
    %p224 = por %p222, %p223
    %s226 = sadd.s32 %s225, 1
    %p229 = scmp.eq.s32.totalorder %s18, 2
    %p230 = scmp.ne.s32.totalorder %s225, %s227
    %p231 = scmp.eq.s32.totalorder %s18, 0
    %p232 = por %p230, %p231
    %p233 = scmp.ne.s32.totalorder %s225, %s227
    %p234 = scmp.eq.s32.totalorder %s23, 2
    %p235 = por %p233, %p234
    %p236 = scmp.ne.s32.totalorder %s227, %s228
    %p237 = scmp.eq.s32.totalorder %s23, 0
    %p238 = por %p236, %p237
    %p239 = scmp.ne.s32.totalorder %s227, %s228
    %p240 = scmp.eq.s32.totalorder %s24, 2
    %p241 = por %p239, %p240
    %p243 = scmp.ne.s32.totalorder %s228, %s242
    %p244 = scmp.eq.s32.totalorder %s24, 0
    %p245 = por %p243, %p244
    %p246 = scmp.le.s32.totalorder 1, %s18
    %p247 = scmp.lt.s32.totalorder %s18, 4
    %p248 = pnand %p246, %p247
    %p249 = pneg %p248
    // Predicated region
    $region9: #{mlp_forward.4} parent=5 // pred_check
      _
    $region10: #{mlp_forward.4} parent=5 // pred_check_branch
      %251 = sbr.rel (%p248) target = $region12
    $region11: #{mlp_forward.4} parent=5 // pred_region
      %s252 = ssub.s32 %s18, 1
      // Predicated region
      $region13: #{mlp_forward.4} parent=11 // pred_check
        %p253 = pneg %p65
      $region14: #{mlp_forward.4} parent=11 // pred_check_branch
        %255 = sbr.rel (%p253) target = $region16
      $region15: #{mlp_forward.4} parent=11 // pred_region
        _
      $region16: #{mlp_forward.4} parent=11 // pred_fallthru
        _
      // Predicated region
      $region17: #{mlp_forward.4} parent=11 // pred_check
        %p256 = pneg %p86
      $region18: #{mlp_forward.4} parent=11 // pred_check_branch
        %258 = sbr.rel (%p256) target = $region20
      $region19: #{mlp_forward.4} parent=11 // pred_region
        _
      $region20: #{mlp_forward.4} parent=11 // pred_fallthru
        _
      // Predicated region
      $region21: #{mlp_forward.4} parent=11 // pred_check
        %p259 = pneg %p107
      $region22: #{mlp_forward.4} parent=11 // pred_check_branch
        %261 = sbr.rel (%p259) target = $region24
      $region23: #{mlp_forward.4} parent=11 // pred_region
        _
      $region24: #{mlp_forward.4} parent=11 // pred_fallthru
        _
      // Predicated region
      $region25: #{mlp_forward.4} parent=11 // pred_check
        %p262 = pneg %p128
      $region26: #{mlp_forward.4} parent=11 // pred_check_branch
        %264 = sbr.rel (%p262) target = $region28
      $region27: #{mlp_forward.4} parent=11 // pred_region
        _
      $region28: #{mlp_forward.4} parent=11 // pred_fallthru
        _
      // Predicated region
      $region29: #{mlp_forward.4} parent=11 // pred_check
        %p265 = pneg %p149
      $region30: #{mlp_forward.4} parent=11 // pred_check_branch
        %267 = sbr.rel (%p265) target = $region32
      $region31: #{mlp_forward.4} parent=11 // pred_region
        _
      $region32: #{mlp_forward.4} parent=11 // pred_fallthru
        _
      // Predicated region
      $region33: #{mlp_forward.4} parent=11 // pred_check
        %p268 = pneg %p170
      $region34: #{mlp_forward.4} parent=11 // pred_check_branch
        %270 = sbr.rel (%p268) target = $region36
      $region35: #{mlp_forward.4} parent=11 // pred_region
        _
      $region36: #{mlp_forward.4} parent=11 // pred_fallthru
        _
    $region12: #{mlp_forward.4} parent=5 // pred_fallthru
      _
    %p271 = scmp.lt.s32.totalorder %s18, 3
    // Predicated region
    $region37: #{mlp_forward.4} parent=5 // pred_check
      %p272 = pneg %p271
    $region38: #{mlp_forward.4} parent=5 // pred_check_branch
      %274 = sbr.rel (%p272) target = $region40
    $region39: #{mlp_forward.4} parent=5 // pred_region
      // Predicated region
      $region41: #{mlp_forward.4} parent=39 // pred_check
        %p275 = pneg %p38
      $region42: #{mlp_forward.4} parent=39 // pred_check_branch
        %277 = sbr.rel (%p275) target = $region44
      $region43: #{mlp_forward.4} parent=39 // pred_region
        %s278 = smul.u32 16, %s18
        %p279 = scmp.lt.s32.totalorder %s278, 47
        %s280 = scalar_select %p279, %s278, 47
        %s281 = smul.addr %s280, 4
        %s282 = scalar_lea.vmem %s1, %s281
        %s283 = smul.u32 16, %s18
      $region44: #{mlp_forward.4} parent=39 // pred_fallthru
        _
    $region40: #{mlp_forward.4} parent=5 // pred_fallthru
      _
    %p284 = scmp.le.s32.totalorder 1, %s18
    %p285 = scmp.lt.s32.totalorder %s18, 4
    %p286 = pnand %p284, %p285
    %p287 = pneg %p286
    // Predicated region
    $region45: #{mlp_forward.4} parent=5 // pred_check
      _
    $region46: #{mlp_forward.4} parent=5 // pred_check_branch
      %289 = sbr.rel (%p286) target = $region48
    $region47: #{mlp_forward.4} parent=5 // pred_region
      %s290 = ssub.s32 %s18, 1
      %s291 = smul.u32 16, %s23
      %p292 = scmp.lt.s32.totalorder %s291, 47
      %s293 = scalar_select %p292, %s291, 47
      %s294 = smul.addr %s293, 4
      %s295 = scalar_lea.vmem %s1, %s294
      %p296 = pneg %p44
      %p297 = pneg %p41
      %p298 = pneg %p65
      %p299 = pneg %p62
      %p300 = pneg %p86
      %p301 = pneg %p83
      %p302 = pneg %p107
      %p303 = pneg %p104
      %p304 = pneg %p128
      %p305 = pneg %p125
      %p306 = pneg %p149
      %p307 = pneg %p146
      %p308 = pneg %p170
      %p309 = pneg %p167
      %p310 = pneg %p196
      %p311 = pneg %p193
      %s312 = smul.u32 16, %s23
      %p313 = scmp.lt.s32.totalorder %s312, 47
      %s314 = scalar_select %p313, %s312, 47
      %s315 = smul.addr %s314, 4
      %s316 = scalar_lea.vmem %s8, %s315
      %p317 = pneg %p217
      %p318 = pneg %p214
      %p319 = pneg %p238
      %p320 = pneg %p235
      %s321 = smul.u32 16, %s23
      %p322 = scmp.lt.s32.totalorder %s321, 47
      %s323 = scalar_select %p322, %s321, 47
      %s324 = smul.addr %s323, 4
      %s325 = scalar_lea.vmem %s1, %s324
      %s326 = smul.u32 16, %s23
      %s327 = smul.u32 16, %s23
      %p328 = scmp.lt.s32.totalorder %s327, 47
      %s329 = scalar_select %p328, %s327, 47
      %s330 = smul.addr %s329, 4
      %s331 = scalar_lea.vmem %s8, %s330
      %s332 = smul.u32 16, %s23
      %p333 = scmp.eq.s32.totalorder %s23, 0
      // Predicated region
      $region49: #{mlp_forward.4} parent=47 // pred_check
        %p334 = pneg %p333
      $region50: #{mlp_forward.4} parent=47 // pred_check_branch
        %336 = sbr.rel (%p334) target = $region52
      $region51: #{mlp_forward.4} parent=47 // pred_region
        %337 = vst [vmem:[#allocation2] sm:$0x1] 0.0
        %338 = vst [vmem:[#allocation3] sm:$0x1] 0.0
      $region52: #{mlp_forward.4} parent=47 // pred_fallthru
        _
      %v339 = vld [vmem:[%s325] sm:$0xf]
      %v340 = vld [vmem:[%s325 + $0x4] sm:$0xf]
      %v341 = vld [vmem:[%s325 + $0x8] sm:$0xf]
      %v342 = vld [vmem:[%s325 + $0xc] sm:$0xf]
      %v343 = vld [vmem:[%s325 + $0x10] sm:$0xf]
      %v344 = vld [vmem:[%s325 + $0x14] sm:$0xf]
      %v345 = vld [vmem:[%s325 + $0x18] sm:$0xf]
      %v346 = vld [vmem:[%s325 + $0x1c] sm:$0xf]
      %v347 = vld [vmem:[%s325 + $0x20] sm:$0xf]
      %v348 = vld [vmem:[%s325 + $0x24] sm:$0xf]
      %v349 = vld [vmem:[%s325 + $0x28] sm:$0xf]
      %v350 = vld [vmem:[%s325 + $0x2c] sm:$0xf]
      %v351 = vld [vmem:[%s325 + $0x30] sm:$0xf]
      %v352 = vld [vmem:[%s325 + $0x34] sm:$0xf]
      %v353 = vld [vmem:[%s325 + $0x38] sm:$0xf]
      %v354 = vld [vmem:[%s325 + $0x3c] sm:$0xf]
      %v355 = vunpack.c.l.bf16 %v339
      %v356 = vunpack.c.l.bf16 %v340
      %v357 = vunpack.c.l.bf16 %v341
      %v358 = vunpack.c.l.bf16 %v342
      %v359 = vunpack.c.l.bf16 %v343
      %v360 = vunpack.c.l.bf16 %v344
      %v361 = vunpack.c.l.bf16 %v345
      %v362 = vunpack.c.l.bf16 %v346
      %v363 = vunpack.c.l.bf16 %v347
      %v364 = vunpack.c.l.bf16 %v348
      %v365 = vunpack.c.l.bf16 %v349
      %v366 = vunpack.c.l.bf16 %v350
      %v367 = vunpack.c.l.bf16 %v351
      %v368 = vunpack.c.l.bf16 %v352
      %v369 = vunpack.c.l.bf16 %v353
      %v370 = vunpack.c.l.bf16 %v354
      %v371 = vld [vmem:[%s2] sm:$0x1]
      %v373 = vperm.slane %v371, 0
      %v375 = vmul.f32 %v355, %v373
      %v376 = vmul.f32 %v356, %v373
      %v377 = vmul.f32 %v357, %v373
      %v378 = vmul.f32 %v358, %v373
      %v379 = vmul.f32 %v359, %v373
      %v380 = vmul.f32 %v360, %v373
      %v381 = vmul.f32 %v361, %v373
      %v382 = vmul.f32 %v362, %v373
      %v383 = vmul.f32 %v363, %v373
      %v384 = vmul.f32 %v364, %v373
      %v385 = vmul.f32 %v365, %v373
      %v386 = vmul.f32 %v366, %v373
      %v387 = vmul.f32 %v367, %v373
      %v388 = vmul.f32 %v368, %v373
      %v389 = vmul.f32 %v369, %v373
      %v390 = vmul.f32 %v370, %v373
      %v391 = vld [vmem:[%s3] sm:$0x1]
      %v393 = vperm.slane %v391, 0
      %v395 = vadd.f32 %v375, %v393
      %v396 = vadd.f32 %v376, %v393
      %v397 = vadd.f32 %v377, %v393
      %v398 = vadd.f32 %v378, %v393
      %v399 = vadd.f32 %v379, %v393
      %v400 = vadd.f32 %v380, %v393
      %v401 = vadd.f32 %v381, %v393
      %v402 = vadd.f32 %v382, %v393
      %v403 = vadd.f32 %v383, %v393
      %v404 = vadd.f32 %v384, %v393
      %v405 = vadd.f32 %v385, %v393
      %v406 = vadd.f32 %v386, %v393
      %v407 = vadd.f32 %v387, %v393
      %v408 = vadd.f32 %v388, %v393
      %v409 = vadd.f32 %v389, %v393
      %v410 = vadd.f32 %v390, %v393
      %v411 = vmax.f32 %v395, 0.0
      %v412 = vmax.f32 %v396, 0.0
      %v413 = vmax.f32 %v397, 0.0
      %v414 = vmax.f32 %v398, 0.0
      %v415 = vmax.f32 %v399, 0.0
      %v416 = vmax.f32 %v400, 0.0
      %v417 = vmax.f32 %v401, 0.0
      %v418 = vmax.f32 %v402, 0.0
      %v419 = vmax.f32 %v403, 0.0
      %v420 = vmax.f32 %v404, 0.0
      %v421 = vmax.f32 %v405, 0.0
      %v422 = vmax.f32 %v406, 0.0
      %v423 = vmax.f32 %v407, 0.0
      %v424 = vmax.f32 %v408, 0.0
      %v425 = vmax.f32 %v409, 0.0
      %v426 = vmax.f32 %v410, 0.0
      %v427 = vpack.c.bf16 %v412, %v411
      %v428 = vpack.c.bf16 %v414, %v413
      %v429 = vpack.c.bf16 %v416, %v415
      %v430 = vpack.c.bf16 %v418, %v417
      %v431 = vpack.c.bf16 %v420, %v419
      %v432 = vpack.c.bf16 %v422, %v421
      %v433 = vpack.c.bf16 %v424, %v423
      %v434 = vpack.c.bf16 %v426, %v425
      %v435 = vld [vmem:[%s4] sm:$0xf]
      %v436 = vld [vmem:[%s4 + $0x4] sm:$0xf]
      %v437 = vld [vmem:[%s4 + $0x8] sm:$0xf]
      %v438 = vld [vmem:[%s4 + $0xc] sm:$0xf]
      %v439 = vld [vmem:[%s4 + $0x10] sm:$0xf]
      %v440 = vld [vmem:[%s4 + $0x14] sm:$0xf]
      %v441 = vld [vmem:[%s4 + $0x18] sm:$0xf]
      %v442 = vld [vmem:[%s4 + $0x1c] sm:$0xf]
      %v443 = vld [vmem:[%s4 + $0x20] sm:$0xf]
      %v444 = vld [vmem:[%s4 + $0x24] sm:$0xf]
      %v445 = vld [vmem:[%s4 + $0x28] sm:$0xf]
      %v446 = vld [vmem:[%s4 + $0x2c] sm:$0xf]
      %v447 = vld [vmem:[%s4 + $0x30] sm:$0xf]
      %v448 = vld [vmem:[%s4 + $0x34] sm:$0xf]
      %v449 = vld [vmem:[%s4 + $0x38] sm:$0xf]
      %v450 = vld [vmem:[%s4 + $0x3c] sm:$0xf]
      %v451 = vld [vmem:[%s5] sm:$0x1]
      %v453 = vperm.slane %v451, 0
      %v471 = vunpack.c.l.b16 %v435
      %v472 = vunpack.c.l.b16 %v436
      %v473 = vunpack.c.l.b16 %v437
      %v474 = vunpack.c.l.b16 %v438
      %v475 = vunpack.c.l.b16 %v439
      %v476 = vunpack.c.l.b16 %v440
      %v477 = vunpack.c.l.b16 %v441
      %v478 = vunpack.c.l.b16 %v442
      %v479 = vunpack.c.l.b16 %v443
      %v480 = vunpack.c.l.b16 %v444
      %v481 = vunpack.c.l.b16 %v445
      %v482 = vunpack.c.l.b16 %v446
      %v483 = vunpack.c.l.b16 %v447
      %v484 = vunpack.c.l.b16 %v448
      %v485 = vunpack.c.l.b16 %v449
      %v486 = vunpack.c.l.b16 %v450
      %v487 = vpack.c.b16 %v472, %v471
      %v488 = vpack.c.b16 %v474, %v473
      %v489 = vpack.c.b16 %v476, %v475
      %v490 = vpack.c.b16 %v478, %v477
      %v491 = vpack.c.b16 %v480, %v479
      %v492 = vpack.c.b16 %v482, %v481
      %v493 = vpack.c.b16 %v484, %v483
      %v494 = vpack.c.b16 %v486, %v485
      %503 = vmatpush.bf16.msra.mxu0 %v494
      %504 = vmatpush.bf16.msra.mxu0 %v493
      %505 = vmatpush.bf16.msra.mxu0 %v492
      %506 = vmatpush.bf16.msra.mxu0 %v491
      %507 = vmatpush.bf16.msra.mxu0 %v490
      %508 = vmatpush.bf16.msra.mxu0 %v489
      %509 = vmatpush.bf16.msra.mxu0 %v488
      %510 = vmatpush.bf16.msra.mxu0 %v487
      %511 = vmatmul.bf16.gmra.mxu0 %v427
      %v512 = vpop.f32.mrf.mxu0
      %v513 = vadd.f32 %v453, %v512
      %v514 = vpop.f32.mrf.mxu0
      %v515 = vadd.f32 %v453, %v514
      %516 = vmatmul.bf16.gmra.mxu0 %v428
      %v517 = vpop.f32.mrf.mxu0
      %v518 = vadd.f32 %v453, %v517
      %v519 = vpop.f32.mrf.mxu0
      %v520 = vadd.f32 %v453, %v519
      %521 = vmatmul.bf16.gmra.mxu0 %v429
      %v522 = vpop.f32.mrf.mxu0
      %v523 = vadd.f32 %v453, %v522
      %v524 = vpop.f32.mrf.mxu0
      %v525 = vadd.f32 %v453, %v524
      %526 = vmatmul.bf16.gmra.mxu0 %v430
      %v527 = vpop.f32.mrf.mxu0
      %v528 = vadd.f32 %v453, %v527
      %v529 = vpop.f32.mrf.mxu0
      %v530 = vadd.f32 %v453, %v529
      %531 = vmatmul.bf16.gmra.mxu0 %v431
      %v532 = vpop.f32.mrf.mxu0
      %v533 = vadd.f32 %v453, %v532
      %v534 = vpop.f32.mrf.mxu0
      %v535 = vadd.f32 %v453, %v534
      %536 = vmatmul.bf16.gmra.mxu0 %v432
      %v537 = vpop.f32.mrf.mxu0
      %v538 = vadd.f32 %v453, %v537
      %v539 = vpop.f32.mrf.mxu0
      %v540 = vadd.f32 %v453, %v539
      %541 = vmatmul.bf16.gmra.mxu0 %v433
      %v542 = vpop.f32.mrf.mxu0
      %v543 = vadd.f32 %v453, %v542
      %v544 = vpop.f32.mrf.mxu0
      %v545 = vadd.f32 %v453, %v544
      %546 = vmatmul.bf16.gmra.mxu0 %v434
      %v547 = vpop.f32.mrf.mxu0
      %v548 = vadd.f32 %v453, %v547
      %v549 = vpop.f32.mrf.mxu0
      %v550 = vadd.f32 %v453, %v549
      %551 = vdwg.mxu0
      %v552 = vpack.c.bf16 %v513, %v513
      %v553 = vpack.c.bf16 %v515, %v515
      %v554 = vpack.c.bf16 %v518, %v518
      %v555 = vpack.c.bf16 %v520, %v520
      %v556 = vpack.c.bf16 %v523, %v523
      %v557 = vpack.c.bf16 %v525, %v525
      %v558 = vpack.c.bf16 %v528, %v528
      %v559 = vpack.c.bf16 %v530, %v530
      %v560 = vpack.c.bf16 %v533, %v533
      %v561 = vpack.c.bf16 %v535, %v535
      %v562 = vpack.c.bf16 %v538, %v538
      %v563 = vpack.c.bf16 %v540, %v540
      %v564 = vpack.c.bf16 %v543, %v543
      %v565 = vpack.c.bf16 %v545, %v545
      %v566 = vpack.c.bf16 %v548, %v548
      %v567 = vpack.c.bf16 %v550, %v550
      %568 = vst [vmem:[%s331] sm:$0xf] %v552
      %569 = vst [vmem:[%s331 + $0x4] sm:$0xf] %v553
      %570 = vst [vmem:[%s331 + $0x8] sm:$0xf] %v554
      %571 = vst [vmem:[%s331 + $0xc] sm:$0xf] %v555
      %572 = vst [vmem:[%s331 + $0x10] sm:$0xf] %v556
      %573 = vst [vmem:[%s331 + $0x14] sm:$0xf] %v557
      %574 = vst [vmem:[%s331 + $0x18] sm:$0xf] %v558
      %575 = vst [vmem:[%s331 + $0x1c] sm:$0xf] %v559
      %576 = vst [vmem:[%s331 + $0x20] sm:$0xf] %v560
      %577 = vst [vmem:[%s331 + $0x24] sm:$0xf] %v561
      %578 = vst [vmem:[%s331 + $0x28] sm:$0xf] %v562
      %579 = vst [vmem:[%s331 + $0x2c] sm:$0xf] %v563
      %580 = vst [vmem:[%s331 + $0x30] sm:$0xf] %v564
      %581 = vst [vmem:[%s331 + $0x34] sm:$0xf] %v565
      %582 = vst [vmem:[%s331 + $0x38] sm:$0xf] %v566
      %583 = vst [vmem:[%s331 + $0x3c] sm:$0xf] %v567
      %s584 = smul.u32 %s23, 128
      %v585 = vlaneseq
      %v586 = vshrl.u32 %v585, 7
      %v587 = vadd.s32 %v586, 8
      %v588 = vadd.s32 %v586, 16
      %v589 = vadd.s32 %v586, 24
      %v590 = vadd.s32 %v586, 32
      %v591 = vadd.s32 %v586, 40
      %v592 = vadd.s32 %v586, 48
      %v593 = vadd.s32 %v586, 56
      %v594 = vadd.s32 %v586, 64
      %v595 = vadd.s32 %v586, 72
      %v596 = vadd.s32 %v586, 80
      %v597 = vadd.s32 %v586, 88
      %v598 = vadd.s32 %v586, 96
      %v599 = vadd.s32 %v586, 104
      %v600 = vadd.s32 %v586, 112
      %v601 = vadd.s32 %v586, 120
      %v602 = vstv %s584
      %v603 = vadd.s32 %v602, %v586
      %v604 = vadd.s32 %v602, %v587
      %v605 = vadd.s32 %v602, %v588
      %v606 = vadd.s32 %v602, %v589
      %v607 = vadd.s32 %v602, %v590
      %v608 = vadd.s32 %v602, %v591
      %v609 = vadd.s32 %v602, %v592
      %v610 = vadd.s32 %v602, %v593
      %v611 = vadd.s32 %v602, %v594
      %v612 = vadd.s32 %v602, %v595
      %v613 = vadd.s32 %v602, %v596
      %v614 = vadd.s32 %v602, %v597
      %v615 = vadd.s32 %v602, %v598
      %v616 = vadd.s32 %v602, %v599
      %v617 = vadd.s32 %v602, %v600
      %v618 = vadd.s32 %v602, %v601
      %s619 = sld [smem:[#allocation5]]
      %v620 = vstv %s619
      %vm621 = vcmp.lt.s32.totalorder %v603, %v620
      %vm622 = vcmp.lt.s32.totalorder %v604, %v620
      %vm623 = vcmp.lt.s32.totalorder %v605, %v620
      %vm624 = vcmp.lt.s32.totalorder %v606, %v620
      %vm625 = vcmp.lt.s32.totalorder %v607, %v620
      %vm626 = vcmp.lt.s32.totalorder %v608, %v620
      %vm627 = vcmp.lt.s32.totalorder %v609, %v620
      %vm628 = vcmp.lt.s32.totalorder %v610, %v620
      %vm629 = vcmp.lt.s32.totalorder %v611, %v620
      %vm630 = vcmp.lt.s32.totalorder %v612, %v620
      %vm631 = vcmp.lt.s32.totalorder %v613, %v620
      %vm632 = vcmp.lt.s32.totalorder %v614, %v620
      %vm633 = vcmp.lt.s32.totalorder %v615, %v620
      %vm634 = vcmp.lt.s32.totalorder %v616, %v620
      %vm635 = vcmp.lt.s32.totalorder %v617, %v620
      %vm636 = vcmp.lt.s32.totalorder %v618, %v620
      %v637 = vsel %vm621, 1, 0
      %v638 = vsel %vm622, 1, 0
      %v639 = vsel %vm623, 1, 0
      %v640 = vsel %vm624, 1, 0
      %v641 = vsel %vm625, 1, 0
      %v642 = vsel %vm626, 1, 0
      %v643 = vsel %vm627, 1, 0
      %v644 = vsel %vm628, 1, 0
      %v645 = vsel %vm629, 1, 0
      %v646 = vsel %vm630, 1, 0
      %v647 = vsel %vm631, 1, 0
      %v648 = vsel %vm632, 1, 0
      %v649 = vsel %vm633, 1, 0
      %v650 = vsel %vm634, 1, 0
      %v651 = vsel %vm635, 1, 0
      %v652 = vsel %vm636, 1, 0
      %vm653 = vcmp.eq.s32.totalorder %v637, 1
      %vm654 = vcmp.eq.s32.totalorder %v638, 1
      %vm655 = vcmp.eq.s32.totalorder %v639, 1
      %vm656 = vcmp.eq.s32.totalorder %v640, 1
      %vm657 = vcmp.eq.s32.totalorder %v641, 1
      %vm658 = vcmp.eq.s32.totalorder %v642, 1
      %vm659 = vcmp.eq.s32.totalorder %v643, 1
      %vm660 = vcmp.eq.s32.totalorder %v644, 1
      %vm661 = vcmp.eq.s32.totalorder %v645, 1
      %vm662 = vcmp.eq.s32.totalorder %v646, 1
      %vm663 = vcmp.eq.s32.totalorder %v647, 1
      %vm664 = vcmp.eq.s32.totalorder %v648, 1
      %vm665 = vcmp.eq.s32.totalorder %v649, 1
      %vm666 = vcmp.eq.s32.totalorder %v650, 1
      %vm667 = vcmp.eq.s32.totalorder %v651, 1
      %vm668 = vcmp.eq.s32.totalorder %v652, 1
      %v669 = vsel %vm653, %v513, 0.0
      %v670 = vsel %vm654, %v515, 0.0
      %v671 = vsel %vm655, %v518, 0.0
      %v672 = vsel %vm656, %v520, 0.0
      %v673 = vsel %vm657, %v523, 0.0
      %v674 = vsel %vm658, %v525, 0.0
      %v675 = vsel %vm659, %v528, 0.0
      %v676 = vsel %vm660, %v530, 0.0
      %v677 = vsel %vm661, %v533, 0.0
      %v678 = vsel %vm662, %v535, 0.0
      %v679 = vsel %vm663, %v538, 0.0
      %v680 = vsel %vm664, %v540, 0.0
      %v681 = vsel %vm665, %v543, 0.0
      %v682 = vsel %vm666, %v545, 0.0
      %v683 = vsel %vm667, %v548, 0.0
      %v684 = vsel %vm668, %v550, 0.0
      %v685 = vld [vmem:[#allocation2] sm:$0x1]
      %v686 = vadd.f32 %v669, %v670
      %v687 = vadd.f32 %v686, %v671
      %v688 = vadd.f32 %v687, %v672
      %v689 = vadd.f32 %v688, %v673
      %v690 = vadd.f32 %v689, %v674
      %v691 = vadd.f32 %v690, %v675
      %v692 = vadd.f32 %v691, %v676
      %v693 = vadd.f32 %v692, %v677
      %v694 = vadd.f32 %v693, %v678
      %v695 = vadd.f32 %v694, %v679
      %v696 = vadd.f32 %v695, %v680
      %v697 = vadd.f32 %v696, %v681
      %v698 = vadd.f32 %v697, %v682
      %v699 = vadd.f32 %v698, %v683
      %v700 = vadd.f32 %v699, %v684
      %v701 = vrot.slane %v700, 4
      %v702 = vadd.f32 %v700, %v701
      %v703 = vrot.slane %v702, 2
      %v704 = vadd.f32 %v702, %v703
      %v705 = vrot.slane %v704, 1
      %v706 = vadd.f32 %v704, %v705
      %v707 = vadd.f32 %v685, %v706
      %708 = vst [vmem:[#allocation2] sm:$0x1] %v707
      %v709 = vld [vmem:[#allocation3] sm:$0x1]
      %v710 = vmul.f32 %v669, %v669
      %v711 = vmul.f32 %v670, %v670
      %v712 = vmul.f32 %v671, %v671
      %v713 = vmul.f32 %v672, %v672
      %v714 = vmul.f32 %v673, %v673
      %v715 = vmul.f32 %v674, %v674
      %v716 = vmul.f32 %v675, %v675
      %v717 = vmul.f32 %v676, %v676
      %v718 = vmul.f32 %v677, %v677
      %v719 = vmul.f32 %v678, %v678
      %v720 = vmul.f32 %v679, %v679
      %v721 = vmul.f32 %v680, %v680
      %v722 = vmul.f32 %v681, %v681
      %v723 = vmul.f32 %v682, %v682
      %v724 = vmul.f32 %v683, %v683
      %v725 = vmul.f32 %v684, %v684
      %v726 = vadd.f32 %v710, %v711
      %v727 = vadd.f32 %v726, %v712
      %v728 = vadd.f32 %v727, %v713
      %v729 = vadd.f32 %v728, %v714
      %v730 = vadd.f32 %v729, %v715
      %v731 = vadd.f32 %v730, %v716
      %v732 = vadd.f32 %v731, %v717
      %v733 = vadd.f32 %v732, %v718
      %v734 = vadd.f32 %v733, %v719
      %v735 = vadd.f32 %v734, %v720
      %v736 = vadd.f32 %v735, %v721
      %v737 = vadd.f32 %v736, %v722
      %v738 = vadd.f32 %v737, %v723
      %v739 = vadd.f32 %v738, %v724
      %v740 = vadd.f32 %v739, %v725
      %v741 = vrot.slane %v740, 4
      %v742 = vadd.f32 %v740, %v741
      %v743 = vrot.slane %v742, 2
      %v744 = vadd.f32 %v742, %v743
      %v745 = vrot.slane %v744, 1
      %v746 = vadd.f32 %v744, %v745
      %v747 = vadd.f32 %v709, %v746
      %748 = vst [vmem:[#allocation3] sm:$0x1] %v747
      %p749 = scmp.eq.s32.totalorder %s23, 2
      // Predicated region
      $region53: #{mlp_forward.4} parent=47 // pred_check
        %p750 = pneg %p749
      $region54: #{mlp_forward.4} parent=47 // pred_check_branch
        %752 = sbr.rel (%p750) target = $region56
      $region55: #{mlp_forward.4} parent=47 // pred_region
        %s753 = sld [smem:[#allocation5]]
        %s754 = scvt.s32.f32 %s753
        %v755 = vstv %s754
        %v756 = vrcp.pop %v755
        %v757 = vmul.f32 %v755, %v756
        %v758 = vsub.f32 1.0, %v757
        %v759 = vmul.f32 %v756, %v758
        %v760 = vadd.f32 %v756, %v759
        %vm761 = vweird.f32 %v755
        %vm762 = vweird.f32 %v756
        %vm763 = vmor %vm761, %vm762
        %v764 = vsel %vm763, %v756, %v760
        %v765 = vand.u32 2147483647, %v755
        %vm766 = vcmp.eq.f32.partialorder %v765, 8.507059e+37
        %v767 = vand.u32 %v755, 2147483648
        %v768 = vor.u32 1.1754944e-38, %v767
        %v769 = vsel %vm766, %v768, %v764
        %s770 = vtos %v769
        %v771 = vld [vmem:[#allocation2] sm:$0x1]
        %v772 = vstv %s770
        %v773 = vmul.f32 %v771, %v772
        %v774 = vld [vmem:[#allocation3] sm:$0x1]
        %v775 = vmul.f32 %v774, %v772
        %v776 = vmul.f32 %v773, %v773
        %v777 = vsub.f32 %v775, %v776
        %v778 = vmax.f32 %v777, 0.0
        %v779 = vld [vmem:[%s6] sm:$0x1]
        %v780 = vadd.f32 %v778, 1e-05
        %v781 = vrsqrt.pop %v780
        %v782 = vmul.f32 %v781, %v780
        %v783 = vmul.f32 %v782, %v781
        %v784 = vmul.f32 0.5, %v783
        %v785 = vsub.f32 1.5, %v784
        %v786 = vmul.f32 %v781, %v785
        %vm787 = vweird.f32 %v780
        %vm788 = vweird.f32 %v781
        %vm789 = vmor %vm787, %vm788
        %v790 = vsel %vm789, %v781, %v786
        %v791 = vmul.f32 %v779, %v790
        %792 = vst [vmem:[%s9] sm:$0x1] %v791
        %v793 = vld [vmem:[%s7] sm:$0x1]
        %v794 = vmul.f32 %v773, %v791
        %v795 = vsub.f32 %v793, %v794
        %796 = vst [vmem:[%s10] sm:$0x1] %v795
      $region56: #{mlp_forward.4} parent=47 // pred_fallthru
        _
      %s797 = smul.u32 16, %s23
      %p798 = scmp.lt.s32.totalorder %s797, 47
      %s799 = scalar_select %p798, %s797, 47
      %s800 = smul.addr %s799, 4
      %s801 = scalar_lea.vmem %s8, %s800
      // Predicated region
      $region57: #{mlp_forward.4} parent=47 // pred_check
        %p802 = pneg %p193
      $region58: #{mlp_forward.4} parent=47 // pred_check_branch
        %804 = sbr.rel (%p802) target = $region60
      $region59: #{mlp_forward.4} parent=47 // pred_region
        %s805 = smul.u32 16, %s23
      $region60: #{mlp_forward.4} parent=47 // pred_fallthru
        _
      // Predicated region
      $region61: #{mlp_forward.4} parent=47 // pred_check
        %p806 = pneg %p214
      $region62: #{mlp_forward.4} parent=47 // pred_check_branch
        %808 = sbr.rel (%p806) target = $region64
      $region63: #{mlp_forward.4} parent=47 // pred_region
        _
      $region64: #{mlp_forward.4} parent=47 // pred_fallthru
        _
      // Predicated region
      $region65: #{mlp_forward.4} parent=47 // pred_check
        %p809 = pneg %p235
      $region66: #{mlp_forward.4} parent=47 // pred_check_branch
        %811 = sbr.rel (%p809) target = $region68
      $region67: #{mlp_forward.4} parent=47 // pred_region
        _
      $region68: #{mlp_forward.4} parent=47 // pred_fallthru
        _
      // Predicated region
      $region69: #{mlp_forward.4} parent=47 // pred_check
        %p812 = pneg %p214
      $region70: #{mlp_forward.4} parent=47 // pred_check_branch
        %814 = sbr.rel (%p812) target = $region72
      $region71: #{mlp_forward.4} parent=47 // pred_region
        _
      $region72: #{mlp_forward.4} parent=47 // pred_fallthru
        _
      // Predicated region
      $region73: #{mlp_forward.4} parent=47 // pred_check
        %p815 = pneg %p235
      $region74: #{mlp_forward.4} parent=47 // pred_check_branch
        %817 = sbr.rel (%p815) target = $region76
      $region75: #{mlp_forward.4} parent=47 // pred_region
        _
      $region76: #{mlp_forward.4} parent=47 // pred_fallthru
        _
    $region48: #{mlp_forward.4} parent=5 // pred_fallthru
      _
    %p818 = scmp.le.s32.totalorder 2, %s18
    // Predicated region
    $region77: #{mlp_forward.4} parent=5 // pred_check
      %p819 = pneg %p818
    $region78: #{mlp_forward.4} parent=5 // pred_check_branch
      %821 = sbr.rel (%p819) target = $region80
    $region79: #{mlp_forward.4} parent=5 // pred_region
      %s822 = ssub.s32 %s18, 2
      // Predicated region
      $region81: #{mlp_forward.4} parent=79 // pred_check
        %p823 = pneg %p199
      $region82: #{mlp_forward.4} parent=79 // pred_check_branch
        %825 = sbr.rel (%p823) target = $region84
      $region83: #{mlp_forward.4} parent=79 // pred_region
        %s826 = smul.u32 16, %s24
        %p827 = scmp.lt.s32.totalorder %s826, 47
        %s828 = scalar_select %p827, %s826, 47
        %s829 = smul.addr %s828, 4
        %s830 = scalar_lea.vmem %s8, %s829
      $region84: #{mlp_forward.4} parent=79 // pred_fallthru
        _
    $region80: #{mlp_forward.4} parent=5 // pred_fallthru
      _
  $region6: #{mlp_forward.4} parent=0 // loop_footer
    %s22 = sadd.s32 1, %s18
  $region7: #{mlp_forward.4} parent=0 // loop_footer_branch
    %17 = sbr.rel target = $region3
  $region8: #{mlp_forward.4} parent=0 // loop_exit
    _

</llo_original>
